<compile_context>
chip_gen: v5e
topology: v5e:2x2
jax: 0.10.0
libtpu: 0.0.40
codegen_flags: <defaults>
</compile_context>

<pallas_src>
import jax
import jax.numpy as jnp
from jax.experimental import pallas as pl
from jax.experimental.pallas import tpu as pltpu

# The floor() on the scores makes the result discontinuous; keep every matmul
# (kernel and reference) at full f32 accuracy so both sides agree pre-floor.
jax.config.update("jax_default_matmul_precision", "highest")

_HI = jax.lax.Precision.HIGHEST


def _round_up(x, m):
    return (x + m - 1) // m * m


def _cdiv(a, b):
    return -(-a // b)


def _vmem_capacity_bytes():
    """Generation-aware VMEM capacity (v5e/v6e: 128 MiB, v7x: 64 MiB)."""
    try:
        cap = int(getattr(pltpu.get_tpu_info(), "vmem_capacity_bytes"))
        if cap > 0:
            return cap
    except Exception:
        pass
    return 64 << 20  # conservative (v7x-sized) fallback


def _per_row_vmem_bytes(S, D, itemsize=4):
    """Padded VMEM bytes needed per batch row in one grid step.

    Counts the double-buffered x_seq block rows plus the in-kernel f32
    working slabs (kv / qk / p_exp / scores / p all pad to 128 lanes), plus
    the small per-row (x_non / q2 / z / out) pieces.
    """
    lane = 128
    xseq = 2 * S * _round_up(D, lane) * itemsize          # 2x: double-buffered input
    slabs = 5 * S * lane * 4                              # in-kernel f32 intermediates
    small = 6 * _round_up(2 * D, lane) * 4
    return xseq + slabs + small


def _choose_tiling(B, S, D, itemsize=4):
    """Pick (rows-per-step TB, grid steps).

    TB is sublane-aligned (x8) and capped so the per-step padded working set
    stays well inside this generation's VMEM, targeting ~2 MiB of (padded)
    x_seq bytes per step.  Prefer an even number of grid steps when B is big
    enough to split (keeps v7x's two TensorCores balanced under
    dimension_semantics=("parallel",)); otherwise minimize batch padding.
    """
    per_row = _per_row_vmem_bytes(S, D, itemsize)
    cap = _vmem_capacity_bytes()
    budget = min(cap // 3, 48 << 20)                      # leave pipeline headroom
    tb_budget = max(8, (budget // per_row) // 8 * 8)
    row_bytes = S * _round_up(D, 128) * itemsize          # padded x_seq bytes / row
    tb_target = max(8, _round_up(_cdiv(2 << 20, row_bytes), 8))
    tb_cap = min(tb_budget, tb_target)

    n_min = _cdiv(B, tb_cap)
    best_key, best_tb, best_steps = None, 8, 1
    for n in range(n_min, n_min + 8):
        tb = max(8, min(_round_up(_cdiv(B, n), 8), tb_cap))
        steps = _cdiv(B, tb)
        padded = steps * tb
        # Even step counts keep v7x's 2 TCs balanced; a single step is only
        # acceptable when B is too small to be worth splitting.
        balanced = (steps % 2 == 0) or (steps == 1 and B < 16)
        key = (0 if balanced else 1, padded, steps)
        if best_key is None or key < best_key:
            best_key, best_tb, best_steps = key, tb, steps
    return best_tb, best_steps


def _vmem_limit_bytes(TB, S, D, itemsize=4):
    """Explicit scoped-VMEM limit from the padded double-buffered working set."""
    need = TB * _per_row_vmem_bytes(S, D, itemsize)
    need += 8 * _round_up(2 * D, 128) * max(8, _round_up(D, 8)) * 4   # weights + masks
    limit = _round_up(2 * need + (4 << 20), 1 << 20)
    cap = _vmem_capacity_bytes()
    return int(min(max(limit, 32 << 20), max(cap - (8 << 20), 16 << 20)))


def _mha_kernel(x_non_ref, x_seq_ref, wq_ref, wkv_ref, bq_ref, bkv_ref,
                mask_kn_ref, mask_nv_ref, out_ref):
    """One grid step processes TB batch rows, fully resident in VMEM.

    Per-step views:
      x_non_ref  : (TB, D)          x_seq_ref  : (TB*S, D)   contiguous row slab
      wq_ref     : (D, 2D)  [Wq | 0]        wkv_ref : (D, 2D)  [Wk | Wv]
      bq_ref     : (1, 2D)  [bq | 0]        bkv_ref : (1, 2D)  [bk | bv]
      mask_kn_ref: (2D, nhead)  K-lane -> head, entries = 1/sqrt(hd)
      mask_nv_ref: (nhead, 2D)  head -> V-lane, entries = 1
      out_ref    : (TB, D)
    """
    TB, D = x_non_ref.shape
    RS = x_seq_ref.shape[0]                      # TB * S
    S = RS // TB
    nhead = mask_nv_ref.shape[0]
    f32 = jnp.float32

    xn = x_non_ref[...]                          # (TB, D)
    xs = x_seq_ref[...]                          # (RS, D)

    # --- Projections (MXU, full f32 precision). Q is zero-padded to the K|V
    #     column layout so it aligns lane-for-lane with `kv` below. ---
    q2 = jnp.dot(xn, wq_ref[...], preferred_element_type=f32,
                 precision=_HI) + bq_ref[...]                       # (TB, 2D)
    kv = jnp.dot(xs, wkv_ref[...], preferred_element_type=f32,
                 precision=_HI) + bkv_ref[...]                      # (RS, 2D)
    kv3 = kv.reshape(TB, S, 2 * D)

    # --- Scores for all heads at once; no lane slicing of the big slab.
    #     scores[b,s,n] = (1/sqrt(hd)) * sum_{d in head n} q[b,d]*k[b,s,d]
    #     (scale folded into mask_kn; V lanes are masked to zero there). ---
    qk = (kv3 * q2[:, None, :]).reshape(RS, 2 * D)
    scores = jnp.dot(qk, mask_kn_ref[...], preferred_element_type=f32,
                     precision=_HI)                                 # (RS, nhead)
    # torch `//` on float tensors is floor division.
    scores = jnp.floor(scores).reshape(TB, S, nhead)
    # TODO(synk): optional `mask` argument (masked_fill(mask == 0, -1e9)) not
    # wired in; this implements the module's default mask=None path.

    # --- Softmax over the sequence axis (exact divide for the denominator). ---
    m = jnp.max(scores, axis=1, keepdims=True)
    e = jnp.exp(scores - m)
    denom = jnp.sum(e, axis=1, keepdims=True)
    p = e / denom                                                   # (TB, S, nhead)

    # --- Weighted sum of V: expand head weights directly onto V's lane
    #     positions with one MXU matmul, so the elementwise product with the
    #     un-sliced `kv` lands the result on V lanes. ---
    p_exp = jnp.dot(p.reshape(RS, nhead), mask_nv_ref[...],
                    preferred_element_type=f32, precision=_HI)      # (RS, 2D)
    z_full = jnp.sum(p_exp.reshape(TB, S, 2 * D) * kv3, axis=1)     # (TB, 2D)
    out_ref[...] = z_full[:, D:].astype(out_ref.dtype)              # tiny lane slice


def multi_head_attention(x_non, x_seq, params, nhead):
    B, S, D = x_seq.shape
    assert D % nhead == 0
    head_dim = D // nhead
    dtype = x_non.dtype
    f32 = jnp.float32
    inv_scale = 1.0 / float(head_dim) ** 0.5

    # --- Host-side weight prep (grid-invariant inputs). ---
    wq2 = jnp.concatenate([params["wq"].astype(f32), jnp.zeros((D, D), f32)], axis=1)
    bq2 = jnp.concatenate([params["bq"].astype(f32), jnp.zeros((1, D), f32)], axis=1)
    wkv = jnp.concatenate([params["wk"].astype(f32), params["wv"].astype(f32)], axis=1)
    bkv = jnp.concatenate([params["bk"].astype(f32), params["bv"].astype(f32)], axis=1)

    head_of_d = jnp.arange(D, dtype=jnp.int32) // head_dim
    onehot = (head_of_d[:, None] ==
              jnp.arange(nhead, dtype=jnp.int32)[None, :]).astype(f32)     # (D, nhead)
    # K-lane -> head mask with the score scale folded in; V lanes zeroed.
    mask_kn = jnp.concatenate([onehot * inv_scale,
                               jnp.zeros((D, nhead), f32)], axis=0)         # (2D, nhead)
    # head -> V-lane expansion mask (so the weighted sum lands on V lanes).
    mask_nv = jnp.concatenate([jnp.zeros((nhead, D), f32), onehot.T], axis=1)  # (nhead, 2D)

    # --- Generation-aware batch tiling. ---
    TB, n_steps = _choose_tiling(B, S, D, 4)
    Bp = TB * n_steps
    if Bp != B:
        x_non = jnp.pad(x_non, ((0, Bp - B), (0, 0)))
        x_seq = jnp.pad(x_seq, ((0, Bp - B), (0, 0), (0, 0)))
    # Contiguous (TB*S, D) row slab per grid step; no in-kernel HBM-block reshape.
    x_seq2 = x_seq.reshape(Bp * S, D)

    out = pl.pallas_call(
        _mha_kernel,
        out_shape=jax.ShapeDtypeStruct((Bp, D), dtype),
        grid_spec=pltpu.PrefetchScalarGridSpec(
            num_scalar_prefetch=0,
            grid=(n_steps,),
            in_specs=[
                pl.BlockSpec((TB, D), lambda b: (b, 0)),           # x_non
                pl.BlockSpec((TB * S, D), lambda b: (b, 0)),       # x_seq row slab
                pl.BlockSpec((D, 2 * D), lambda b: (0, 0)),        # [Wq | 0]
                pl.BlockSpec((D, 2 * D), lambda b: (0, 0)),        # [Wk | Wv]
                pl.BlockSpec((1, 2 * D), lambda b: (0, 0)),        # [bq | 0]
                pl.BlockSpec((1, 2 * D), lambda b: (0, 0)),        # [bk | bv]
                pl.BlockSpec((2 * D, nhead), lambda b: (0, 0)),    # K-lane -> head mask
                pl.BlockSpec((nhead, 2 * D), lambda b: (0, 0)),    # head -> V-lane mask
            ],
            out_specs=pl.BlockSpec((TB, D), lambda b: (b, 0)),
        ),
        compiler_params=pltpu.CompilerParams(
            dimension_semantics=("parallel",),
            vmem_limit_bytes=_vmem_limit_bytes(TB, S, D, 4)),
    )(x_non.astype(f32), x_seq2.astype(f32), wq2, wkv, bq2, bkv, mask_kn, mask_nv)

    return out[:B]


def reference(x_non, x_seq, params, nhead):
    """Pure-JAX reference mirroring the PyTorch forward exactly."""
    B, S, D = x_seq.shape
    hd = D // nhead
    q = jnp.dot(x_non, params["wq"], precision=_HI) + params["bq"]
    k = jnp.einsum("bsi,io->bso", x_seq, params["wk"], precision=_HI) + params["bk"]
    v = jnp.einsum("bsi,io->bso", x_seq, params["wv"], precision=_HI) + params["bv"]
    q = q.reshape(B, nhead, hd)
    k = k.reshape(B, S, nhead, hd)
    v = v.reshape(B, S, nhead, hd)
    qk = jnp.einsum("bnd,bsnd->bns", q, k, precision=_HI)
    qk = jnp.floor(qk / jnp.sqrt(jnp.float32(hd)))       # torch `//` on floats
    qk = jax.nn.softmax(qk, axis=-1)
    return jnp.einsum("bns,bsnd->bnd", qk, v, precision=_HI).reshape(B, D)


if __name__ == "__main__":
    NHEAD = 4

    def make_inputs(key, B, S, D):
        kx, ks, kq, kk, kv, kbq, kbk, kbv = jax.random.split(key, 8)
        w_scale = 1.0 / jnp.sqrt(jnp.float32(D))
        x_non = jax.random.normal(kx, (B, D), jnp.float32)
        x_seq = jax.random.normal(ks, (B, S, D), jnp.float32)
        # nn.Linear weights are (dim_out, dim_in); pass transposed (D_in, D_out).
        params = {
            "wq": (jax.random.normal(kq, (D, D), jnp.float32) * w_scale).T,
            "wk": (jax.random.normal(kk, (D, D), jnp.float32) * w_scale).T,
            "wv": (jax.random.normal(kv, (D, D), jnp.float32) * w_scale).T,
            "bq": (jax.random.normal(kbq, (D,), jnp.float32) * w_scale).reshape(1, D),
            "bk": (jax.random.normal(kbk, (D,), jnp.float32) * w_scale).reshape(1, D),
            "bv": (jax.random.normal(kbv, (D,), jnp.float32) * w_scale).reshape(1, D),
        }
        return x_non, x_seq, params

    key = jax.random.PRNGKey(0)
    k1, k2 = jax.random.split(key)

    # Case 1: small shapes consistent with the module (B=2, S=8, D=32, nhead=4).
    x_non, x_seq, params = make_inputs(k1, 2, 8, 32)
    out = jax.block_until_ready(multi_head_attention(x_non, x_seq, params, NHEAD))
    ref = reference(x_non, x_seq, params, NHEAD)
    assert out.shape == (2, 32)
    assert jnp.allclose(out, ref, atol=1e-2, rtol=1e-2), (
        f"max abs diff = {jnp.max(jnp.abs(out - ref))}")

    # Case 2: exercises multi-row batch blocking (TB > 1), an even 2-step grid
    # and batch padding (B=37 -> TB=24, 2 steps).
    x_non2, x_seq2, params2 = make_inputs(k2, 37, 8, 32)
    out2 = jax.block_until_ready(multi_head_attention(x_non2, x_seq2, params2, NHEAD))
    ref2 = reference(x_non2, x_seq2, params2, NHEAD)
    assert out2.shape == (37, 32)
    assert jnp.allclose(out2, ref2, atol=1e-2, rtol=1e-2), (
        f"max abs diff = {jnp.max(jnp.abs(out2 - ref2))}")

    print("KERNEL_OK")
</pallas_src>

<mosaic_0001>
module attributes {stable_mosaic.version = 11 : i64} {
  func.func @_mha_kernel(%arg0: i32, %arg1: memref<8x32xf32, #tpu.memory_space<vmem>>, %arg2: memref<64x32xf32, #tpu.memory_space<vmem>>, %arg3: memref<32x64xf32, #tpu.memory_space<vmem>>, %arg4: memref<32x64xf32, #tpu.memory_space<vmem>>, %arg5: memref<1x64xf32, #tpu.memory_space<vmem>>, %arg6: memref<1x64xf32, #tpu.memory_space<vmem>>, %arg7: memref<64x4xf32, #tpu.memory_space<vmem>>, %arg8: memref<4x64xf32, #tpu.memory_space<vmem>>, %arg9: memref<8x32xf32, #tpu.memory_space<vmem>>) attributes {dimension_semantics = [#tpu.dimension_semantics<parallel>], iteration_bounds = array<i64: 1>, scalar_prefetch = 0 : i64, scratch_operands = 0 : i64, tpu.core_type = #tpu.core_type<tc>, window_params = [{transform_indices = @transform_0, window_bounds = array<i64: 8, 32>}, {transform_indices = @transform_1, window_bounds = array<i64: 64, 32>}, {pipeline_mode = #tpu.pipeline_mode<synchronous>, transform_indices = @transform_2, window_bounds = array<i64: 32, 64>}, {pipeline_mode = #tpu.pipeline_mode<synchronous>, transform_indices = @transform_3, window_bounds = array<i64: 32, 64>}, {pipeline_mode = #tpu.pipeline_mode<synchronous>, transform_indices = @transform_4, window_bounds = array<i64: 1, 64>}, {pipeline_mode = #tpu.pipeline_mode<synchronous>, transform_indices = @transform_5, window_bounds = array<i64: 1, 64>}, {pipeline_mode = #tpu.pipeline_mode<synchronous>, transform_indices = @transform_6, window_bounds = array<i64: 64, 4>}, {pipeline_mode = #tpu.pipeline_mode<synchronous>, transform_indices = @transform_7, window_bounds = array<i64: 4, 64>}, {transform_indices = @transform_8, window_bounds = array<i64: 8, 32>}]} {
    %c0 = arith.constant 0 : index
    %c0_0 = arith.constant 0 : index
    %0 = vector.load %arg1[%c0, %c0_0] : memref<8x32xf32, #tpu.memory_space<vmem>>, vector<8x32xf32>
    %c0_1 = arith.constant 0 : index
    %c0_2 = arith.constant 0 : index
    %1 = vector.load %arg2[%c0_1, %c0_2] : memref<64x32xf32, #tpu.memory_space<vmem>>, vector<64x32xf32>
    %c0_3 = arith.constant 0 : index
    %c0_4 = arith.constant 0 : index
    %2 = vector.load %arg3[%c0_3, %c0_4] : memref<32x64xf32, #tpu.memory_space<vmem>>, vector<32x64xf32>
    %cst = arith.constant dense<0.000000e+00> : vector<8x64xf32>
    %3 = tpu.matmul %0, %2, %cst {dimension_numbers = #tpu.dot_dimension_numbers<[1], [0], [0], [1], [0, 0, 1, 1], [], []>, precision = #tpu.contract_precision<fp32>} : vector<8x32xf32>, vector<32x64xf32>, vector<8x64xf32> -> vector<8x64xf32>
    %c0_5 = arith.constant 0 : index
    %c0_6 = arith.constant 0 : index
    %4 = vector.load %arg5[%c0_5, %c0_6] : memref<1x64xf32, #tpu.memory_space<vmem>>, vector<1x64xf32>
    %5 = vector.broadcast %4 : vector<1x64xf32> to vector<8x64xf32>
    %6 = arith.addf %3, %5 : vector<8x64xf32>
    %c0_7 = arith.constant 0 : index
    %c0_8 = arith.constant 0 : index
    %7 = vector.load %arg4[%c0_7, %c0_8] : memref<32x64xf32, #tpu.memory_space<vmem>>, vector<32x64xf32>
    %cst_9 = arith.constant dense<0.000000e+00> : vector<64x64xf32>
    %8 = tpu.matmul %1, %7, %cst_9 {dimension_numbers = #tpu.dot_dimension_numbers<[1], [0], [0], [1], [0, 0, 1, 1], [], []>, precision = #tpu.contract_precision<fp32>} : vector<64x32xf32>, vector<32x64xf32>, vector<64x64xf32> -> vector<64x64xf32>
    %c0_10 = arith.constant 0 : index
    %c0_11 = arith.constant 0 : index
    %9 = vector.load %arg6[%c0_10, %c0_11] : memref<1x64xf32, #tpu.memory_space<vmem>>, vector<1x64xf32>
    %10 = vector.broadcast %9 : vector<1x64xf32> to vector<64x64xf32>
    %11 = arith.addf %8, %10 : vector<64x64xf32>
    %12 = vector.shape_cast %11 : vector<64x64xf32> to vector<8x8x64xf32>
    %13 = vector.shape_cast %6 : vector<8x64xf32> to vector<8x1x64xf32>
    %14 = vector.broadcast %13 : vector<8x1x64xf32> to vector<8x8x64xf32>
    %15 = arith.mulf %12, %14 : vector<8x8x64xf32>
    %16 = vector.shape_cast %15 : vector<8x8x64xf32> to vector<64x64xf32>
    %c0_12 = arith.constant 0 : index
    %c0_13 = arith.constant 0 : index
    %17 = vector.load %arg7[%c0_12, %c0_13] : memref<64x4xf32, #tpu.memory_space<vmem>>, vector<64x4xf32>
    %cst_14 = arith.constant dense<0.000000e+00> : vector<64x4xf32>
    %18 = tpu.matmul %16, %17, %cst_14 {dimension_numbers = #tpu.dot_dimension_numbers<[1], [0], [0], [1], [0, 0, 1, 1], [], []>, precision = #tpu.contract_precision<fp32>} : vector<64x64xf32>, vector<64x4xf32>, vector<64x4xf32> -> vector<64x4xf32>
    %19 = math.floor %18 : vector<64x4xf32>
    %20 = vector.shape_cast %19 : vector<64x4xf32> to vector<8x8x4xf32>
    %cst_15 = arith.constant dense<0xFF800000> : vector<8x4xf32>
    %21 = vector.multi_reduction <maximumf>, %20, %cst_15 [1] : vector<8x8x4xf32> to vector<8x4xf32>
    %22 = vector.shape_cast %21 : vector<8x4xf32> to vector<8x1x4xf32>
    %23 = vector.broadcast %22 : vector<8x1x4xf32> to vector<8x8x4xf32>
    %24 = arith.subf %20, %23 : vector<8x8x4xf32>
    %25 = math.exp %24 : vector<8x8x4xf32>
    %cst_16 = arith.constant dense<0.000000e+00> : vector<8x4xf32>
    %26 = vector.multi_reduction <add>, %25, %cst_16 [1] : vector<8x8x4xf32> to vector<8x4xf32>
    %27 = vector.shape_cast %26 : vector<8x4xf32> to vector<8x1x4xf32>
    %28 = vector.broadcast %27 : vector<8x1x4xf32> to vector<8x8x4xf32>
    %29 = arith.divf %25, %28 : vector<8x8x4xf32>
    %30 = vector.shape_cast %29 : vector<8x8x4xf32> to vector<64x4xf32>
    %c0_17 = arith.constant 0 : index
    %c0_18 = arith.constant 0 : index
    %31 = vector.load %arg8[%c0_17, %c0_18] : memref<4x64xf32, #tpu.memory_space<vmem>>, vector<4x64xf32>
    %cst_19 = arith.constant dense<0.000000e+00> : vector<64x64xf32>
    %32 = tpu.matmul %30, %31, %cst_19 {dimension_numbers = #tpu.dot_dimension_numbers<[1], [0], [0], [1], [0, 0, 1, 1], [], []>, precision = #tpu.contract_precision<fp32>} : vector<64x4xf32>, vector<4x64xf32>, vector<64x64xf32> -> vector<64x64xf32>
    %33 = vector.shape_cast %32 : vector<64x64xf32> to vector<8x8x64xf32>
    %34 = arith.mulf %33, %12 : vector<8x8x64xf32>
    %cst_20 = arith.constant dense<0.000000e+00> : vector<8x64xf32>
    %35 = vector.multi_reduction <add>, %34, %cst_20 [1] : vector<8x8x64xf32> to vector<8x64xf32>
    %36 = vector.extract_strided_slice %35 {offsets = [0, 32], sizes = [8, 32], strides = [1, 1]} : vector<8x64xf32> to vector<8x32xf32>
    %c0_21 = arith.constant 0 : index
    %c0_22 = arith.constant 0 : index
    %37 = vector.load %arg9[%c0_21, %c0_22] : memref<8x32xf32, #tpu.memory_space<vmem>>, vector<8x32xf32>
    tpu.vector_store %arg9[%c0_21, %c0_22], %36 {strides = array<i32>} : memref<8x32xf32, #tpu.memory_space<vmem>>, vector<8x32xf32>,
    return
  }
  func.func @transform_0(%arg0: i32) -> (i32, i32) {
    %c0_i32 = arith.constant 0 : i32
    %c0_i32_0 = arith.constant 0 : i32
    return %arg0, %c0_i32 : i32, i32
  }
  func.func @transform_1(%arg0: i32) -> (i32, i32) {
    %c0_i32 = arith.constant 0 : i32
    %c0_i32_0 = arith.constant 0 : i32
    return %arg0, %c0_i32 : i32, i32
  }
  func.func @transform_2(%arg0: i32) -> (i32, i32) {
    %c0_i32 = arith.constant 0 : i32
    %c0_i32_0 = arith.constant 0 : i32
    %c0_i32_1 = arith.constant 0 : i32
    return %c0_i32, %c0_i32_0 : i32, i32
  }
  func.func @transform_3(%arg0: i32) -> (i32, i32) {
    %c0_i32 = arith.constant 0 : i32
    %c0_i32_0 = arith.constant 0 : i32
    %c0_i32_1 = arith.constant 0 : i32
    return %c0_i32, %c0_i32_0 : i32, i32
  }
  func.func @transform_4(%arg0: i32) -> (i32, i32) {
    %c0_i32 = arith.constant 0 : i32
    %c0_i32_0 = arith.constant 0 : i32
    %c0_i32_1 = arith.constant 0 : i32
    return %c0_i32, %c0_i32_0 : i32, i32
  }
  func.func @transform_5(%arg0: i32) -> (i32, i32) {
    %c0_i32 = arith.constant 0 : i32
    %c0_i32_0 = arith.constant 0 : i32
    %c0_i32_1 = arith.constant 0 : i32
    return %c0_i32, %c0_i32_0 : i32, i32
  }
  func.func @transform_6(%arg0: i32) -> (i32, i32) {
    %c0_i32 = arith.constant 0 : i32
    %c0_i32_0 = arith.constant 0 : i32
    %c0_i32_1 = arith.constant 0 : i32
    return %c0_i32, %c0_i32_0 : i32, i32
  }
  func.func @transform_7(%arg0: i32) -> (i32, i32) {
    %c0_i32 = arith.constant 0 : i32
    %c0_i32_0 = arith.constant 0 : i32
    %c0_i32_1 = arith.constant 0 : i32
    return %c0_i32, %c0_i32_0 : i32, i32
  }
  func.func @transform_8(%arg0: i32) -> (i32, i32) {
    %c0_i32 = arith.constant 0 : i32
    %c0_i32_0 = arith.constant 0 : i32
    return %arg0, %c0_i32 : i32, i32
  }
}

</mosaic_0001>

<llo_original>
// kernel: tpu_custom_call.1
$region0: #{tpu_custom_call.1}
  #allocation0 [shape = 'u32[]', space=smem, size = 0x4, offset = 0x4, fixed_abs, tag = 'smem constant byte address 0x4 - core index']
  #allocation1 [shape = 'u32[72,128]{1,0:T(1,128)}', space=vmem, size = 0x9000, scoped, tag = 'internal scratch']
  %s0 = inlined_call_operand.vmem [shape: f32[8,32], index: 0, kind: input, shape index: {}]
  %s1 = inlined_call_operand.vmem [shape: f32[64,32], index: 1, kind: input, shape index: {}]
  %s2 = inlined_call_operand.vmem [shape: f32[32,64], index: 2, kind: input, shape index: {}]
  %s3 = inlined_call_operand.vmem [shape: f32[32,64], index: 3, kind: input, shape index: {}]
  %s4 = inlined_call_operand.vmem [shape: f32[1,64], index: 4, kind: input, shape index: {}]
  %s5 = inlined_call_operand.vmem [shape: f32[1,64], index: 5, kind: input, shape index: {}]
  %s6 = inlined_call_operand.vmem [shape: f32[64,4], index: 6, kind: input, shape index: {}]
  %s7 = inlined_call_operand.vmem [shape: f32[4,64], index: 7, kind: input, shape index: {}]
  %s8 = inlined_call_operand.hbm [shape: f32[8,32], index: 8, kind: output, shape index: {}]
  %s9 = sld [smem:[#allocation0]]
  $region42: #{tpu_custom_call.1} parent=0
    _
  %s11 = ssub.s32 1, %s9
  %s12 = scalar_select 0, %s11, %s9
  $region1: #{tpu_custom_call.1} parent=0
    #allocation2 [shape = 'u8[4096]{0}', space=vmem, size = 0x1000, scoped, tag = 'output window, operand 0, single buffered']
    #allocation3 [shape = 's32[1]{0}', space=sflag, size = 0x4, scoped, tag = 'scoped memory for tpu_custom_call.1']
    %13 = vsyncpa [#allocation3], 0
    // Predicated region
    $region2: #{tpu_custom_call.1} parent=1 // pred_check
      _
    $region3: #{tpu_custom_call.1} parent=1 // pred_check_branch
      %15 = sbr.rel (0) target = $region5
    $region4: #{tpu_custom_call.1} parent=1 // pred_region
      _
    $region5: #{tpu_custom_call.1} parent=1 // pred_fallthru
      _
    // Predicated region
    $region6: #{tpu_custom_call.1} parent=1 // pred_check
      _
    $region7: #{tpu_custom_call.1} parent=1 // pred_check_branch
      %17 = sbr.rel (0) target = $region9
    $region8: #{tpu_custom_call.1} parent=1 // pred_region
      _
    $region9: #{tpu_custom_call.1} parent=1 // pred_fallthru
      _
    // Predicated region
    $region10: #{tpu_custom_call.1} parent=1 // pred_check
      _
    $region11: #{tpu_custom_call.1} parent=1 // pred_check_branch
      %19 = sbr.rel (0) target = $region13
    $region12: #{tpu_custom_call.1} parent=1 // pred_region
      _
    $region13: #{tpu_custom_call.1} parent=1 // pred_fallthru
      _
    // Predicated region
    $region14: #{tpu_custom_call.1} parent=1 // pred_check
      _
    $region15: #{tpu_custom_call.1} parent=1 // pred_check_branch
      %21 = sbr.rel (0) target = $region17
    $region16: #{tpu_custom_call.1} parent=1 // pred_region
      _
    $region17: #{tpu_custom_call.1} parent=1 // pred_fallthru
      _
    // Predicated region
    $region18: #{tpu_custom_call.1} parent=1 // pred_check
      _
    $region19: #{tpu_custom_call.1} parent=1 // pred_check_branch
      %23 = sbr.rel (0) target = $region21
    $region20: #{tpu_custom_call.1} parent=1 // pred_region
      _
    $region21: #{tpu_custom_call.1} parent=1 // pred_fallthru
      _
    // Predicated region
    $region22: #{tpu_custom_call.1} parent=1 // pred_check
      _
    $region23: #{tpu_custom_call.1} parent=1 // pred_check_branch
      %25 = sbr.rel (0) target = $region25
    $region24: #{tpu_custom_call.1} parent=1 // pred_region
      _
    $region25: #{tpu_custom_call.1} parent=1 // pred_fallthru
      _
    // Predicated region
    $region26: #{tpu_custom_call.1} parent=1 // pred_check
      _
    $region27: #{tpu_custom_call.1} parent=1 // pred_check_branch
      %27 = sbr.rel (0) target = $region29
    $region28: #{tpu_custom_call.1} parent=1 // pred_region
      _
    $region29: #{tpu_custom_call.1} parent=1 // pred_fallthru
      _
    // Predicated region
    $region30: #{tpu_custom_call.1} parent=1 // pred_check
      _
    $region31: #{tpu_custom_call.1} parent=1 // pred_check_branch
      %29 = sbr.rel (0) target = $region33
    $region32: #{tpu_custom_call.1} parent=1 // pred_region
      _
    $region33: #{tpu_custom_call.1} parent=1 // pred_fallthru
      _
    %v30 = vld [vmem:[%s0] sm:$0xff]
    %v31 = vld [vmem:[%s1] sm:$0xff]
    %v32 = vld [vmem:[%s1 + $0x8] sm:$0xff]
    %v33 = vld [vmem:[%s1 + $0x10] sm:$0xff]
    %v34 = vld [vmem:[%s1 + $0x18] sm:$0xff]
    %v35 = vld [vmem:[%s1 + $0x20] sm:$0xff]
    %v36 = vld [vmem:[%s1 + $0x28] sm:$0xff]
    %v37 = vld [vmem:[%s1 + $0x30] sm:$0xff]
    %v38 = vld [vmem:[%s1 + $0x38] sm:$0xff]
    %v39 = vld [vmem:[%s2] sm:$0xff]
    %v40 = vld [vmem:[%s2 + $0x8] sm:$0xff]
    %v41 = vld [vmem:[%s2 + $0x10] sm:$0xff]
    %v42 = vld [vmem:[%s2 + $0x18] sm:$0xff]
    %v43 = vld [vmem:[%s4] sm:$0x1]
    %v45 = vperm.slane %v43, 0
    %vm47 = vcmask 261120
    %v49 = vsel %vm47, %v30, 0
    %51 = vmatpush.msra.mxu0 0.0
    %52 = vmatpush.msra.mxu0 0.0
    %53 = vmatpush.msra.mxu0 0.0
    %54 = vmatpush.msra.mxu0 0.0
    %55 = vmatpush.msra.mxu0 0.0
    %56 = vmatpush.msra.mxu0 0.0
    %57 = vmatpush.msra.mxu0 0.0
    %58 = vmatpush.msra.mxu0 0.0
    %59 = vmatpush.msra.mxu0 0.0
    %60 = vmatpush.msra.mxu0 0.0
    %61 = vmatpush.msra.mxu0 0.0
    %62 = vmatpush.msra.mxu0 0.0
    %v63 = vand.u32 %v42, 4294901760
    %64 = vmatpush.msra.mxu0 %v63
    %v65 = vand.u32 %v41, 4294901760
    %66 = vmatpush.msra.mxu0 %v65
    %v67 = vand.u32 %v40, 4294901760
    %68 = vmatpush.msra.mxu0 %v67
    %v69 = vand.u32 %v39, 4294901760
    %70 = vmatpush.msra.mxu0 %v69
    %v71 = vand.u32 %v49, 4294901760
    %v72 = vsub.f32 %v49, %v71
    %v73 = vand.u32 %v72, 4294901760
    %v74 = vsub.f32 %v72, %v73
    %v75 = vand.u32 %v74, 4294901760
    %76 = vmatmul.f32.gmra.mxu0 %v75
    %v77 = vpop.f32.mrf.mxu0
    %v78 = vadd.f32 %v45, %v77
    %79 = vdwg.mxu0
    %80 = vmatpush.msra.mxu0 0.0
    %81 = vmatpush.msra.mxu0 0.0
    %82 = vmatpush.msra.mxu0 0.0
    %83 = vmatpush.msra.mxu0 0.0
    %84 = vmatpush.msra.mxu0 0.0
    %85 = vmatpush.msra.mxu0 0.0
    %86 = vmatpush.msra.mxu0 0.0
    %87 = vmatpush.msra.mxu0 0.0
    %88 = vmatpush.msra.mxu0 0.0
    %89 = vmatpush.msra.mxu0 0.0
    %90 = vmatpush.msra.mxu0 0.0
    %91 = vmatpush.msra.mxu0 0.0
    %v92 = vand.u32 %v42, 4294901760
    %v93 = vsub.f32 %v42, %v92
    %v94 = vand.u32 %v93, 4294901760
    %v95 = vsub.f32 %v93, %v94
    %v96 = vand.u32 %v95, 4294901760
    %97 = vmatpush.msra.mxu0 %v96
    %v98 = vand.u32 %v41, 4294901760
    %v99 = vsub.f32 %v41, %v98
    %v100 = vand.u32 %v99, 4294901760
    %v101 = vsub.f32 %v99, %v100
    %v102 = vand.u32 %v101, 4294901760
    %103 = vmatpush.msra.mxu0 %v102
    %v104 = vand.u32 %v40, 4294901760
    %v105 = vsub.f32 %v40, %v104
    %v106 = vand.u32 %v105, 4294901760
    %v107 = vsub.f32 %v105, %v106
    %v108 = vand.u32 %v107, 4294901760
    %109 = vmatpush.msra.mxu0 %v108
    %v110 = vand.u32 %v39, 4294901760
    %v111 = vsub.f32 %v39, %v110
    %v112 = vand.u32 %v111, 4294901760
    %v113 = vsub.f32 %v111, %v112
    %v114 = vand.u32 %v113, 4294901760
    %115 = vmatpush.msra.mxu0 %v114
    %v116 = vand.u32 %v49, 4294901760
    %117 = vmatmul.f32.gmra.mxu0 %v116
    %v118 = vpop.f32.mrf.mxu0
    %v119 = vadd.f32 %v78, %v118
    %120 = vdwg.mxu0
    %121 = vmatpush.msra.mxu0 0.0
    %122 = vmatpush.msra.mxu0 0.0
    %123 = vmatpush.msra.mxu0 0.0
    %124 = vmatpush.msra.mxu0 0.0
    %125 = vmatpush.msra.mxu0 0.0
    %126 = vmatpush.msra.mxu0 0.0
    %127 = vmatpush.msra.mxu0 0.0
    %128 = vmatpush.msra.mxu0 0.0
    %129 = vmatpush.msra.mxu0 0.0
    %130 = vmatpush.msra.mxu0 0.0
    %131 = vmatpush.msra.mxu0 0.0
    %132 = vmatpush.msra.mxu0 0.0
    %v133 = vand.u32 %v42, 4294901760
    %v134 = vsub.f32 %v42, %v133
    %135 = vmatpush.msra.mxu0 %v134
    %v136 = vand.u32 %v41, 4294901760
    %v137 = vsub.f32 %v41, %v136
    %138 = vmatpush.msra.mxu0 %v137
    %v139 = vand.u32 %v40, 4294901760
    %v140 = vsub.f32 %v40, %v139
    %141 = vmatpush.msra.mxu0 %v140
    %v142 = vand.u32 %v39, 4294901760
    %v143 = vsub.f32 %v39, %v142
    %144 = vmatpush.msra.mxu0 %v143
    %v145 = vand.u32 %v49, 4294901760
    %v146 = vsub.f32 %v49, %v145
    %147 = vmatmul.f32.gmra.mxu0 %v146
    %v148 = vpop.f32.mrf.mxu0
    %v149 = vadd.f32 %v119, %v148
    %150 = vdwg.mxu0
    %151 = vmatpush.msra.mxu0 0.0
    %152 = vmatpush.msra.mxu0 0.0
    %153 = vmatpush.msra.mxu0 0.0
    %154 = vmatpush.msra.mxu0 0.0
    %155 = vmatpush.msra.mxu0 0.0
    %156 = vmatpush.msra.mxu0 0.0
    %157 = vmatpush.msra.mxu0 0.0
    %158 = vmatpush.msra.mxu0 0.0
    %159 = vmatpush.msra.mxu0 0.0
    %160 = vmatpush.msra.mxu0 0.0
    %161 = vmatpush.msra.mxu0 0.0
    %162 = vmatpush.msra.mxu0 0.0
    %v163 = vand.u32 %v42, 4294901760
    %164 = vmatpush.msra.mxu0 %v163
    %v165 = vand.u32 %v41, 4294901760
    %166 = vmatpush.msra.mxu0 %v165
    %v167 = vand.u32 %v40, 4294901760
    %168 = vmatpush.msra.mxu0 %v167
    %v169 = vand.u32 %v39, 4294901760
    %170 = vmatpush.msra.mxu0 %v169
    %v171 = vand.u32 %v49, 4294901760
    %v172 = vsub.f32 %v49, %v171
    %v173 = vand.u32 %v172, 4294901760
    %174 = vmatmul.f32.gmra.mxu0 %v173
    %v175 = vpop.f32.mrf.mxu0
    %v176 = vadd.f32 %v149, %v175
    %177 = vdwg.mxu0
    %178 = vmatpush.msra.mxu0 0.0
    %179 = vmatpush.msra.mxu0 0.0
    %180 = vmatpush.msra.mxu0 0.0
    %181 = vmatpush.msra.mxu0 0.0
    %182 = vmatpush.msra.mxu0 0.0
    %183 = vmatpush.msra.mxu0 0.0
    %184 = vmatpush.msra.mxu0 0.0
    %185 = vmatpush.msra.mxu0 0.0
    %186 = vmatpush.msra.mxu0 0.0
    %187 = vmatpush.msra.mxu0 0.0
    %188 = vmatpush.msra.mxu0 0.0
    %189 = vmatpush.msra.mxu0 0.0
    %v190 = vand.u32 %v42, 4294901760
    %v191 = vsub.f32 %v42, %v190
    %v192 = vand.u32 %v191, 4294901760
    %193 = vmatpush.msra.mxu0 %v192
    %v194 = vand.u32 %v41, 4294901760
    %v195 = vsub.f32 %v41, %v194
    %v196 = vand.u32 %v195, 4294901760
    %197 = vmatpush.msra.mxu0 %v196
    %v198 = vand.u32 %v40, 4294901760
    %v199 = vsub.f32 %v40, %v198
    %v200 = vand.u32 %v199, 4294901760
    %201 = vmatpush.msra.mxu0 %v200
    %v202 = vand.u32 %v39, 4294901760
    %v203 = vsub.f32 %v39, %v202
    %v204 = vand.u32 %v203, 4294901760
    %205 = vmatpush.msra.mxu0 %v204
    %v206 = vand.u32 %v49, 4294901760
    %207 = vmatmul.f32.gmra.mxu0 %v206
    %v208 = vpop.f32.mrf.mxu0
    %v209 = vadd.f32 %v176, %v208
    %210 = vdwg.mxu0
    %211 = vmatpush.msra.mxu0 0.0
    %212 = vmatpush.msra.mxu0 0.0
    %213 = vmatpush.msra.mxu0 0.0
    %214 = vmatpush.msra.mxu0 0.0
    %215 = vmatpush.msra.mxu0 0.0
    %216 = vmatpush.msra.mxu0 0.0
    %217 = vmatpush.msra.mxu0 0.0
    %218 = vmatpush.msra.mxu0 0.0
    %219 = vmatpush.msra.mxu0 0.0
    %220 = vmatpush.msra.mxu0 0.0
    %221 = vmatpush.msra.mxu0 0.0
    %222 = vmatpush.msra.mxu0 0.0
    %v223 = vand.u32 %v42, 4294901760
    %224 = vmatpush.msra.mxu0 %v223
    %v225 = vand.u32 %v41, 4294901760
    %226 = vmatpush.msra.mxu0 %v225
    %v227 = vand.u32 %v40, 4294901760
    %228 = vmatpush.msra.mxu0 %v227
    %v229 = vand.u32 %v39, 4294901760
    %230 = vmatpush.msra.mxu0 %v229
    %v231 = vand.u32 %v49, 4294901760
    %232 = vmatmul.f32.gmra.mxu0 %v231
    %v233 = vpop.f32.mrf.mxu0
    %v234 = vadd.f32 %v209, %v233
    %235 = vdwg.mxu0
    %v236 = vld [vmem:[%s3] sm:$0xff]
    %v237 = vld [vmem:[%s3 + $0x8] sm:$0xff]
    %v238 = vld [vmem:[%s3 + $0x10] sm:$0xff]
    %v239 = vld [vmem:[%s3 + $0x18] sm:$0xff]
    %v240 = vld [vmem:[%s5] sm:$0x1]
    %v242 = vperm.slane %v240, 0
    %v245 = vsel %vm47, %v31, 0
    %v248 = vsel %vm47, %v32, 0
    %v251 = vsel %vm47, %v33, 0
    %v254 = vsel %vm47, %v34, 0
    %v257 = vsel %vm47, %v35, 0
    %v260 = vsel %vm47, %v36, 0
    %v263 = vsel %vm47, %v37, 0
    %v266 = vsel %vm47, %v38, 0
    %268 = vmatpush.msra.mxu0 0.0
    %269 = vmatpush.msra.mxu0 0.0
    %270 = vmatpush.msra.mxu0 0.0
    %271 = vmatpush.msra.mxu0 0.0
    %272 = vmatpush.msra.mxu0 0.0
    %273 = vmatpush.msra.mxu0 0.0
    %274 = vmatpush.msra.mxu0 0.0
    %275 = vmatpush.msra.mxu0 0.0
    %276 = vmatpush.msra.mxu0 0.0
    %277 = vmatpush.msra.mxu0 0.0
    %278 = vmatpush.msra.mxu0 0.0
    %279 = vmatpush.msra.mxu0 0.0
    %v280 = vand.u32 %v239, 4294901760
    %281 = vmatpush.msra.mxu0 %v280
    %v282 = vand.u32 %v238, 4294901760
    %283 = vmatpush.msra.mxu0 %v282
    %v284 = vand.u32 %v237, 4294901760
    %285 = vmatpush.msra.mxu0 %v284
    %v286 = vand.u32 %v236, 4294901760
    %287 = vmatpush.msra.mxu0 %v286
    %v288 = vand.u32 %v245, 4294901760
    %v289 = vsub.f32 %v245, %v288
    %v290 = vand.u32 %v289, 4294901760
    %v291 = vsub.f32 %v289, %v290
    %v292 = vand.u32 %v291, 4294901760
    %293 = vmatmul.f32.gmra.mxu0 %v292
    %v294 = vpop.f32.mrf.mxu0
    %v295 = vadd.f32 %v242, %v294
    %v296 = vand.u32 %v248, 4294901760
    %v297 = vsub.f32 %v248, %v296
    %v298 = vand.u32 %v297, 4294901760
    %v299 = vsub.f32 %v297, %v298
    %v300 = vand.u32 %v299, 4294901760
    %301 = vmatmul.f32.gmra.mxu0 %v300
    %v302 = vpop.f32.mrf.mxu0
    %v303 = vadd.f32 %v242, %v302
    %v304 = vand.u32 %v251, 4294901760
    %v305 = vsub.f32 %v251, %v304
    %v306 = vand.u32 %v305, 4294901760
    %v307 = vsub.f32 %v305, %v306
    %v308 = vand.u32 %v307, 4294901760
    %309 = vmatmul.f32.gmra.mxu0 %v308
    %v310 = vpop.f32.mrf.mxu0
    %v311 = vadd.f32 %v242, %v310
    %v312 = vand.u32 %v254, 4294901760
    %v313 = vsub.f32 %v254, %v312
    %v314 = vand.u32 %v313, 4294901760
    %v315 = vsub.f32 %v313, %v314
    %v316 = vand.u32 %v315, 4294901760
    %317 = vmatmul.f32.gmra.mxu0 %v316
    %v318 = vpop.f32.mrf.mxu0
    %v319 = vadd.f32 %v242, %v318
    %v320 = vand.u32 %v257, 4294901760
    %v321 = vsub.f32 %v257, %v320
    %v322 = vand.u32 %v321, 4294901760
    %v323 = vsub.f32 %v321, %v322
    %v324 = vand.u32 %v323, 4294901760
    %325 = vmatmul.f32.gmra.mxu0 %v324
    %v326 = vpop.f32.mrf.mxu0
    %v327 = vadd.f32 %v242, %v326
    %v328 = vand.u32 %v260, 4294901760
    %v329 = vsub.f32 %v260, %v328
    %v330 = vand.u32 %v329, 4294901760
    %v331 = vsub.f32 %v329, %v330
    %v332 = vand.u32 %v331, 4294901760
    %333 = vmatmul.f32.gmra.mxu0 %v332
    %v334 = vpop.f32.mrf.mxu0
    %v335 = vadd.f32 %v242, %v334
    %v336 = vand.u32 %v263, 4294901760
    %v337 = vsub.f32 %v263, %v336
    %v338 = vand.u32 %v337, 4294901760
    %v339 = vsub.f32 %v337, %v338
    %v340 = vand.u32 %v339, 4294901760
    %341 = vmatmul.f32.gmra.mxu0 %v340
    %v342 = vpop.f32.mrf.mxu0
    %v343 = vadd.f32 %v242, %v342
    %v344 = vand.u32 %v266, 4294901760
    %v345 = vsub.f32 %v266, %v344
    %v346 = vand.u32 %v345, 4294901760
    %v347 = vsub.f32 %v345, %v346
    %v348 = vand.u32 %v347, 4294901760
    %349 = vmatmul.f32.gmra.mxu0 %v348
    %v350 = vpop.f32.mrf.mxu0
    %v351 = vadd.f32 %v242, %v350
    %352 = vdwg.mxu0
    %353 = vmatpush.msra.mxu0 0.0
    %354 = vmatpush.msra.mxu0 0.0
    %355 = vmatpush.msra.mxu0 0.0
    %356 = vmatpush.msra.mxu0 0.0
    %357 = vmatpush.msra.mxu0 0.0
    %358 = vmatpush.msra.mxu0 0.0
    %359 = vmatpush.msra.mxu0 0.0
    %360 = vmatpush.msra.mxu0 0.0
    %361 = vmatpush.msra.mxu0 0.0
    %362 = vmatpush.msra.mxu0 0.0
    %363 = vmatpush.msra.mxu0 0.0
    %364 = vmatpush.msra.mxu0 0.0
    %v365 = vand.u32 %v239, 4294901760
    %v366 = vsub.f32 %v239, %v365
    %v367 = vand.u32 %v366, 4294901760
    %v368 = vsub.f32 %v366, %v367
    %v369 = vand.u32 %v368, 4294901760
    %370 = vmatpush.msra.mxu0 %v369
    %v371 = vand.u32 %v238, 4294901760
    %v372 = vsub.f32 %v238, %v371
    %v373 = vand.u32 %v372, 4294901760
    %v374 = vsub.f32 %v372, %v373
    %v375 = vand.u32 %v374, 4294901760
    %376 = vmatpush.msra.mxu0 %v375
    %v377 = vand.u32 %v237, 4294901760
    %v378 = vsub.f32 %v237, %v377
    %v379 = vand.u32 %v378, 4294901760
    %v380 = vsub.f32 %v378, %v379
    %v381 = vand.u32 %v380, 4294901760
    %382 = vmatpush.msra.mxu0 %v381
    %v383 = vand.u32 %v236, 4294901760
    %v384 = vsub.f32 %v236, %v383
    %v385 = vand.u32 %v384, 4294901760
    %v386 = vsub.f32 %v384, %v385
    %v387 = vand.u32 %v386, 4294901760
    %388 = vmatpush.msra.mxu0 %v387
    %v389 = vand.u32 %v245, 4294901760
    %390 = vmatmul.f32.gmra.mxu0 %v389
    %v391 = vpop.f32.mrf.mxu0
    %v392 = vadd.f32 %v295, %v391
    %v393 = vand.u32 %v248, 4294901760
    %394 = vmatmul.f32.gmra.mxu0 %v393
    %v395 = vpop.f32.mrf.mxu0
    %v396 = vadd.f32 %v303, %v395
    %v397 = vand.u32 %v251, 4294901760
    %398 = vmatmul.f32.gmra.mxu0 %v397
    %v399 = vpop.f32.mrf.mxu0
    %v400 = vadd.f32 %v311, %v399
    %v401 = vand.u32 %v254, 4294901760
    %402 = vmatmul.f32.gmra.mxu0 %v401
    %v403 = vpop.f32.mrf.mxu0
    %v404 = vadd.f32 %v319, %v403
    %v405 = vand.u32 %v257, 4294901760
    %406 = vmatmul.f32.gmra.mxu0 %v405
    %v407 = vpop.f32.mrf.mxu0
    %v408 = vadd.f32 %v327, %v407
    %v409 = vand.u32 %v260, 4294901760
    %410 = vmatmul.f32.gmra.mxu0 %v409
    %v411 = vpop.f32.mrf.mxu0
    %v412 = vadd.f32 %v335, %v411
    %v413 = vand.u32 %v263, 4294901760
    %414 = vmatmul.f32.gmra.mxu0 %v413
    %v415 = vpop.f32.mrf.mxu0
    %v416 = vadd.f32 %v343, %v415
    %v417 = vand.u32 %v266, 4294901760
    %418 = vmatmul.f32.gmra.mxu0 %v417
    %v419 = vpop.f32.mrf.mxu0
    %v420 = vadd.f32 %v351, %v419
    %421 = vdwg.mxu0
    %422 = vmatpush.msra.mxu0 0.0
    %423 = vmatpush.msra.mxu0 0.0
    %424 = vmatpush.msra.mxu0 0.0
    %425 = vmatpush.msra.mxu0 0.0
    %426 = vmatpush.msra.mxu0 0.0
    %427 = vmatpush.msra.mxu0 0.0
    %428 = vmatpush.msra.mxu0 0.0
    %429 = vmatpush.msra.mxu0 0.0
    %430 = vmatpush.msra.mxu0 0.0
    %431 = vmatpush.msra.mxu0 0.0
    %432 = vmatpush.msra.mxu0 0.0
    %433 = vmatpush.msra.mxu0 0.0
    %v434 = vand.u32 %v239, 4294901760
    %v435 = vsub.f32 %v239, %v434
    %436 = vmatpush.msra.mxu0 %v435
    %v437 = vand.u32 %v238, 4294901760
    %v438 = vsub.f32 %v238, %v437
    %439 = vmatpush.msra.mxu0 %v438
    %v440 = vand.u32 %v237, 4294901760
    %v441 = vsub.f32 %v237, %v440
    %442 = vmatpush.msra.mxu0 %v441
    %v443 = vand.u32 %v236, 4294901760
    %v444 = vsub.f32 %v236, %v443
    %445 = vmatpush.msra.mxu0 %v444
    %v446 = vand.u32 %v245, 4294901760
    %v447 = vsub.f32 %v245, %v446
    %448 = vmatmul.f32.gmra.mxu0 %v447
    %v449 = vpop.f32.mrf.mxu0
    %v450 = vadd.f32 %v392, %v449
    %v451 = vand.u32 %v248, 4294901760
    %v452 = vsub.f32 %v248, %v451
    %453 = vmatmul.f32.gmra.mxu0 %v452
    %v454 = vpop.f32.mrf.mxu0
    %v455 = vadd.f32 %v396, %v454
    %v456 = vand.u32 %v251, 4294901760
    %v457 = vsub.f32 %v251, %v456
    %458 = vmatmul.f32.gmra.mxu0 %v457
    %v459 = vpop.f32.mrf.mxu0
    %v460 = vadd.f32 %v400, %v459
    %v461 = vand.u32 %v254, 4294901760
    %v462 = vsub.f32 %v254, %v461
    %463 = vmatmul.f32.gmra.mxu0 %v462
    %v464 = vpop.f32.mrf.mxu0
    %v465 = vadd.f32 %v404, %v464
    %v466 = vand.u32 %v257, 4294901760
    %v467 = vsub.f32 %v257, %v466
    %468 = vmatmul.f32.gmra.mxu0 %v467
    %v469 = vpop.f32.mrf.mxu0
    %v470 = vadd.f32 %v408, %v469
    %v471 = vand.u32 %v260, 4294901760
    %v472 = vsub.f32 %v260, %v471
    %473 = vmatmul.f32.gmra.mxu0 %v472
    %v474 = vpop.f32.mrf.mxu0
    %v475 = vadd.f32 %v412, %v474
    %v476 = vand.u32 %v263, 4294901760
    %v477 = vsub.f32 %v263, %v476
    %478 = vmatmul.f32.gmra.mxu0 %v477
    %v479 = vpop.f32.mrf.mxu0
    %v480 = vadd.f32 %v416, %v479
    %v481 = vand.u32 %v266, 4294901760
    %v482 = vsub.f32 %v266, %v481
    %483 = vmatmul.f32.gmra.mxu0 %v482
    %v484 = vpop.f32.mrf.mxu0
    %v485 = vadd.f32 %v420, %v484
    %486 = vdwg.mxu0
    %487 = vmatpush.msra.mxu0 0.0
    %488 = vmatpush.msra.mxu0 0.0
    %489 = vmatpush.msra.mxu0 0.0
    %490 = vmatpush.msra.mxu0 0.0
    %491 = vmatpush.msra.mxu0 0.0
    %492 = vmatpush.msra.mxu0 0.0
    %493 = vmatpush.msra.mxu0 0.0
    %494 = vmatpush.msra.mxu0 0.0
    %495 = vmatpush.msra.mxu0 0.0
    %496 = vmatpush.msra.mxu0 0.0
    %497 = vmatpush.msra.mxu0 0.0
    %498 = vmatpush.msra.mxu0 0.0
    %v499 = vand.u32 %v239, 4294901760
    %500 = vmatpush.msra.mxu0 %v499
    %v501 = vand.u32 %v238, 4294901760
    %502 = vmatpush.msra.mxu0 %v501
    %v503 = vand.u32 %v237, 4294901760
    %504 = vmatpush.msra.mxu0 %v503
    %v505 = vand.u32 %v236, 4294901760
    %506 = vmatpush.msra.mxu0 %v505
    %v507 = vand.u32 %v245, 4294901760
    %v508 = vsub.f32 %v245, %v507
    %v509 = vand.u32 %v508, 4294901760
    %510 = vmatmul.f32.gmra.mxu0 %v509
    %v511 = vpop.f32.mrf.mxu0
    %v512 = vadd.f32 %v450, %v511
    %v513 = vand.u32 %v248, 4294901760
    %v514 = vsub.f32 %v248, %v513
    %v515 = vand.u32 %v514, 4294901760
    %516 = vmatmul.f32.gmra.mxu0 %v515
    %v517 = vpop.f32.mrf.mxu0
    %v518 = vadd.f32 %v455, %v517
    %v519 = vand.u32 %v251, 4294901760
    %v520 = vsub.f32 %v251, %v519
    %v521 = vand.u32 %v520, 4294901760
    %522 = vmatmul.f32.gmra.mxu0 %v521
    %v523 = vpop.f32.mrf.mxu0
    %v524 = vadd.f32 %v460, %v523
    %v525 = vand.u32 %v254, 4294901760
    %v526 = vsub.f32 %v254, %v525
    %v527 = vand.u32 %v526, 4294901760
    %528 = vmatmul.f32.gmra.mxu0 %v527
    %v529 = vpop.f32.mrf.mxu0
    %v530 = vadd.f32 %v465, %v529
    %v531 = vand.u32 %v257, 4294901760
    %v532 = vsub.f32 %v257, %v531
    %v533 = vand.u32 %v532, 4294901760
    %534 = vmatmul.f32.gmra.mxu0 %v533
    %v535 = vpop.f32.mrf.mxu0
    %v536 = vadd.f32 %v470, %v535
    %v537 = vand.u32 %v260, 4294901760
    %v538 = vsub.f32 %v260, %v537
    %v539 = vand.u32 %v538, 4294901760
    %540 = vmatmul.f32.gmra.mxu0 %v539
    %v541 = vpop.f32.mrf.mxu0
    %v542 = vadd.f32 %v475, %v541
    %v543 = vand.u32 %v263, 4294901760
    %v544 = vsub.f32 %v263, %v543
    %v545 = vand.u32 %v544, 4294901760
    %546 = vmatmul.f32.gmra.mxu0 %v545
    %v547 = vpop.f32.mrf.mxu0
    %v548 = vadd.f32 %v480, %v547
    %v549 = vand.u32 %v266, 4294901760
    %v550 = vsub.f32 %v266, %v549
    %v551 = vand.u32 %v550, 4294901760
    %552 = vmatmul.f32.gmra.mxu0 %v551
    %v553 = vpop.f32.mrf.mxu0
    %v554 = vadd.f32 %v485, %v553
    %555 = vdwg.mxu0
    %556 = vmatpush.msra.mxu0 0.0
    %557 = vmatpush.msra.mxu0 0.0
    %558 = vmatpush.msra.mxu0 0.0
    %559 = vmatpush.msra.mxu0 0.0
    %560 = vmatpush.msra.mxu0 0.0
    %561 = vmatpush.msra.mxu0 0.0
    %562 = vmatpush.msra.mxu0 0.0
    %563 = vmatpush.msra.mxu0 0.0
    %564 = vmatpush.msra.mxu0 0.0
    %565 = vmatpush.msra.mxu0 0.0
    %566 = vmatpush.msra.mxu0 0.0
    %567 = vmatpush.msra.mxu0 0.0
    %v568 = vand.u32 %v239, 4294901760
    %v569 = vsub.f32 %v239, %v568
    %v570 = vand.u32 %v569, 4294901760
    %571 = vmatpush.msra.mxu0 %v570
    %v572 = vand.u32 %v238, 4294901760
    %v573 = vsub.f32 %v238, %v572
    %v574 = vand.u32 %v573, 4294901760
    %575 = vmatpush.msra.mxu0 %v574
    %v576 = vand.u32 %v237, 4294901760
    %v577 = vsub.f32 %v237, %v576
    %v578 = vand.u32 %v577, 4294901760
    %579 = vmatpush.msra.mxu0 %v578
    %v580 = vand.u32 %v236, 4294901760
    %v581 = vsub.f32 %v236, %v580
    %v582 = vand.u32 %v581, 4294901760
    %583 = vmatpush.msra.mxu0 %v582
    %v584 = vand.u32 %v245, 4294901760
    %585 = vmatmul.f32.gmra.mxu0 %v584
    %v586 = vpop.f32.mrf.mxu0
    %v587 = vadd.f32 %v512, %v586
    %v588 = vand.u32 %v248, 4294901760
    %589 = vmatmul.f32.gmra.mxu0 %v588
    %v590 = vpop.f32.mrf.mxu0
    %v591 = vadd.f32 %v518, %v590
    %v592 = vand.u32 %v251, 4294901760
    %593 = vmatmul.f32.gmra.mxu0 %v592
    %v594 = vpop.f32.mrf.mxu0
    %v595 = vadd.f32 %v524, %v594
    %v596 = vand.u32 %v254, 4294901760
    %597 = vmatmul.f32.gmra.mxu0 %v596
    %v598 = vpop.f32.mrf.mxu0
    %v599 = vadd.f32 %v530, %v598
    %v600 = vand.u32 %v257, 4294901760
    %601 = vmatmul.f32.gmra.mxu0 %v600
    %v602 = vpop.f32.mrf.mxu0
    %v603 = vadd.f32 %v536, %v602
    %v604 = vand.u32 %v260, 4294901760
    %605 = vmatmul.f32.gmra.mxu0 %v604
    %v606 = vpop.f32.mrf.mxu0
    %v607 = vadd.f32 %v542, %v606
    %v608 = vand.u32 %v263, 4294901760
    %609 = vmatmul.f32.gmra.mxu0 %v608
    %v610 = vpop.f32.mrf.mxu0
    %v611 = vadd.f32 %v548, %v610
    %v612 = vand.u32 %v266, 4294901760
    %613 = vmatmul.f32.gmra.mxu0 %v612
    %v614 = vpop.f32.mrf.mxu0
    %v615 = vadd.f32 %v554, %v614
    %616 = vdwg.mxu0
    %617 = vmatpush.msra.mxu0 0.0
    %618 = vmatpush.msra.mxu0 0.0
    %619 = vmatpush.msra.mxu0 0.0
    %620 = vmatpush.msra.mxu0 0.0
    %621 = vmatpush.msra.mxu0 0.0
    %622 = vmatpush.msra.mxu0 0.0
    %623 = vmatpush.msra.mxu0 0.0
    %624 = vmatpush.msra.mxu0 0.0
    %625 = vmatpush.msra.mxu0 0.0
    %626 = vmatpush.msra.mxu0 0.0
    %627 = vmatpush.msra.mxu0 0.0
    %628 = vmatpush.msra.mxu0 0.0
    %v629 = vand.u32 %v239, 4294901760
    %630 = vmatpush.msra.mxu0 %v629
    %v631 = vand.u32 %v238, 4294901760
    %632 = vmatpush.msra.mxu0 %v631
    %v633 = vand.u32 %v237, 4294901760
    %634 = vmatpush.msra.mxu0 %v633
    %v635 = vand.u32 %v236, 4294901760
    %636 = vmatpush.msra.mxu0 %v635
    %v637 = vand.u32 %v245, 4294901760
    %638 = vmatmul.f32.gmra.mxu0 %v637
    %v639 = vpop.f32.mrf.mxu0
    %v640 = vadd.f32 %v587, %v639
    %v641 = vand.u32 %v248, 4294901760
    %642 = vmatmul.f32.gmra.mxu0 %v641
    %v643 = vpop.f32.mrf.mxu0
    %v644 = vadd.f32 %v591, %v643
    %v645 = vand.u32 %v251, 4294901760
    %646 = vmatmul.f32.gmra.mxu0 %v645
    %v647 = vpop.f32.mrf.mxu0
    %v648 = vadd.f32 %v595, %v647
    %v649 = vand.u32 %v254, 4294901760
    %650 = vmatmul.f32.gmra.mxu0 %v649
    %v651 = vpop.f32.mrf.mxu0
    %v652 = vadd.f32 %v599, %v651
    %v653 = vand.u32 %v257, 4294901760
    %654 = vmatmul.f32.gmra.mxu0 %v653
    %v655 = vpop.f32.mrf.mxu0
    %v656 = vadd.f32 %v603, %v655
    %v657 = vand.u32 %v260, 4294901760
    %658 = vmatmul.f32.gmra.mxu0 %v657
    %v659 = vpop.f32.mrf.mxu0
    %v660 = vadd.f32 %v607, %v659
    %v661 = vand.u32 %v263, 4294901760
    %662 = vmatmul.f32.gmra.mxu0 %v661
    %v663 = vpop.f32.mrf.mxu0
    %v664 = vadd.f32 %v611, %v663
    %v665 = vand.u32 %v266, 4294901760
    %666 = vmatmul.f32.gmra.mxu0 %v665
    %v667 = vpop.f32.mrf.mxu0
    %v668 = vadd.f32 %v615, %v667
    %669 = vdwg.mxu0
    %v671 = vrot.slane %v234, 1
    %v672 = vrot.slane %v234, 2
    %v673 = vrot.slane %v234, 3
    %v674 = vrot.slane %v234, 4
    %v675 = vrot.slane %v234, 5
    %v676 = vrot.slane %v234, 6
    %v677 = vrot.slane %v234, 7
    %v678 = vperm.slane %v234, 0
    %v679 = vperm.slane %v671, 0
    %v680 = vperm.slane %v672, 0
    %v681 = vperm.slane %v673, 0
    %v682 = vperm.slane %v674, 0
    %v683 = vperm.slane %v675, 0
    %v684 = vperm.slane %v676, 0
    %v685 = vperm.slane %v677, 0
    %v694 = vmul.f32 %v640, %v678
    %v695 = vmul.f32 %v644, %v679
    %v696 = vmul.f32 %v648, %v680
    %v697 = vmul.f32 %v652, %v681
    %v698 = vmul.f32 %v656, %v682
    %v699 = vmul.f32 %v660, %v683
    %v700 = vmul.f32 %v664, %v684
    %v701 = vmul.f32 %v668, %v685
    %v702 = vld [vmem:[%s6] sm:$0xff]
    %v703 = vld [vmem:[%s6 + $0x8] sm:$0xff]
    %v704 = vld [vmem:[%s6 + $0x10] sm:$0xff]
    %v705 = vld [vmem:[%s6 + $0x18] sm:$0xff]
    %v706 = vld [vmem:[%s6 + $0x20] sm:$0xff]
    %v707 = vld [vmem:[%s6 + $0x28] sm:$0xff]
    %v708 = vld [vmem:[%s6 + $0x30] sm:$0xff]
    %v709 = vld [vmem:[%s6 + $0x38] sm:$0xff]
    %vm710 = vcmask 523264
    %v712 = vsel %vm710, %v694, 0
    %v715 = vsel %vm710, %v695, 0
    %v718 = vsel %vm710, %v696, 0
    %v721 = vsel %vm710, %v697, 0
    %v724 = vsel %vm710, %v698, 0
    %v727 = vsel %vm710, %v699, 0
    %v730 = vsel %vm710, %v700, 0
    %v733 = vsel %vm710, %v701, 0
    %735 = vmatpush.msra.mxu0 0.0
    %736 = vmatpush.msra.mxu0 0.0
    %737 = vmatpush.msra.mxu0 0.0
    %738 = vmatpush.msra.mxu0 0.0
    %739 = vmatpush.msra.mxu0 0.0
    %740 = vmatpush.msra.mxu0 0.0
    %741 = vmatpush.msra.mxu0 0.0
    %742 = vmatpush.msra.mxu0 0.0
    %v743 = vand.u32 %v709, 4294901760
    %744 = vmatpush.msra.mxu0 %v743
    %v745 = vand.u32 %v708, 4294901760
    %746 = vmatpush.msra.mxu0 %v745
    %v747 = vand.u32 %v707, 4294901760
    %748 = vmatpush.msra.mxu0 %v747
    %v749 = vand.u32 %v706, 4294901760
    %750 = vmatpush.msra.mxu0 %v749
    %v751 = vand.u32 %v705, 4294901760
    %752 = vmatpush.msra.mxu0 %v751
    %v753 = vand.u32 %v704, 4294901760
    %754 = vmatpush.msra.mxu0 %v753
    %v755 = vand.u32 %v703, 4294901760
    %756 = vmatpush.msra.mxu0 %v755
    %v757 = vand.u32 %v702, 4294901760
    %758 = vmatpush.msra.mxu0 %v757
    %v759 = vand.u32 %v712, 4294901760
    %v760 = vsub.f32 %v712, %v759
    %v761 = vand.u32 %v760, 4294901760
    %v762 = vsub.f32 %v760, %v761
    %v763 = vand.u32 %v762, 4294901760
    %764 = vmatmul.f32.gmra.mxu0 %v763
    %v765 = vpop.f32.mrf.mxu0
    %v766 = vadd.f32 0.0, %v765
    %v767 = vand.u32 %v715, 4294901760
    %v768 = vsub.f32 %v715, %v767
    %v769 = vand.u32 %v768, 4294901760
    %v770 = vsub.f32 %v768, %v769
    %v771 = vand.u32 %v770, 4294901760
    %772 = vmatmul.f32.gmra.mxu0 %v771
    %v773 = vpop.f32.mrf.mxu0
    %v774 = vadd.f32 0.0, %v773
    %v775 = vand.u32 %v718, 4294901760
    %v776 = vsub.f32 %v718, %v775
    %v777 = vand.u32 %v776, 4294901760
    %v778 = vsub.f32 %v776, %v777
    %v779 = vand.u32 %v778, 4294901760
    %780 = vmatmul.f32.gmra.mxu0 %v779
    %v781 = vpop.f32.mrf.mxu0
    %v782 = vadd.f32 0.0, %v781
    %v783 = vand.u32 %v721, 4294901760
    %v784 = vsub.f32 %v721, %v783
    %v785 = vand.u32 %v784, 4294901760
    %v786 = vsub.f32 %v784, %v785
    %v787 = vand.u32 %v786, 4294901760
    %788 = vmatmul.f32.gmra.mxu0 %v787
    %v789 = vpop.f32.mrf.mxu0
    %v790 = vadd.f32 0.0, %v789
    %v791 = vand.u32 %v724, 4294901760
    %v792 = vsub.f32 %v724, %v791
    %v793 = vand.u32 %v792, 4294901760
    %v794 = vsub.f32 %v792, %v793
    %v795 = vand.u32 %v794, 4294901760
    %796 = vmatmul.f32.gmra.mxu0 %v795
    %v797 = vpop.f32.mrf.mxu0
    %v798 = vadd.f32 0.0, %v797
    %v799 = vand.u32 %v727, 4294901760
    %v800 = vsub.f32 %v727, %v799
    %v801 = vand.u32 %v800, 4294901760
    %v802 = vsub.f32 %v800, %v801
    %v803 = vand.u32 %v802, 4294901760
    %804 = vmatmul.f32.gmra.mxu0 %v803
    %v805 = vpop.f32.mrf.mxu0
    %v806 = vadd.f32 0.0, %v805
    %v807 = vand.u32 %v730, 4294901760
    %v808 = vsub.f32 %v730, %v807
    %v809 = vand.u32 %v808, 4294901760
    %v810 = vsub.f32 %v808, %v809
    %v811 = vand.u32 %v810, 4294901760
    %812 = vmatmul.f32.gmra.mxu0 %v811
    %v813 = vpop.f32.mrf.mxu0
    %v814 = vadd.f32 0.0, %v813
    %v815 = vand.u32 %v733, 4294901760
    %v816 = vsub.f32 %v733, %v815
    %v817 = vand.u32 %v816, 4294901760
    %v818 = vsub.f32 %v816, %v817
    %v819 = vand.u32 %v818, 4294901760
    %820 = vmatmul.f32.gmra.mxu0 %v819
    %v821 = vpop.f32.mrf.mxu0
    %v822 = vadd.f32 0.0, %v821
    %823 = vdwg.mxu0
    %824 = vmatpush.msra.mxu0 0.0
    %825 = vmatpush.msra.mxu0 0.0
    %826 = vmatpush.msra.mxu0 0.0
    %827 = vmatpush.msra.mxu0 0.0
    %828 = vmatpush.msra.mxu0 0.0
    %829 = vmatpush.msra.mxu0 0.0
    %830 = vmatpush.msra.mxu0 0.0
    %831 = vmatpush.msra.mxu0 0.0
    %v832 = vand.u32 %v709, 4294901760
    %v833 = vsub.f32 %v709, %v832
    %v834 = vand.u32 %v833, 4294901760
    %v835 = vsub.f32 %v833, %v834
    %v836 = vand.u32 %v835, 4294901760
    %837 = vmatpush.msra.mxu0 %v836
    %v838 = vand.u32 %v708, 4294901760
    %v839 = vsub.f32 %v708, %v838
    %v840 = vand.u32 %v839, 4294901760
    %v841 = vsub.f32 %v839, %v840
    %v842 = vand.u32 %v841, 4294901760
    %843 = vmatpush.msra.mxu0 %v842
    %v844 = vand.u32 %v707, 4294901760
    %v845 = vsub.f32 %v707, %v844
    %v846 = vand.u32 %v845, 4294901760
    %v847 = vsub.f32 %v845, %v846
    %v848 = vand.u32 %v847, 4294901760
    %849 = vmatpush.msra.mxu0 %v848
    %v850 = vand.u32 %v706, 4294901760
    %v851 = vsub.f32 %v706, %v850
    %v852 = vand.u32 %v851, 4294901760
    %v853 = vsub.f32 %v851, %v852
    %v854 = vand.u32 %v853, 4294901760
    %855 = vmatpush.msra.mxu0 %v854
    %v856 = vand.u32 %v705, 4294901760
    %v857 = vsub.f32 %v705, %v856
    %v858 = vand.u32 %v857, 4294901760
    %v859 = vsub.f32 %v857, %v858
    %v860 = vand.u32 %v859, 4294901760
    %861 = vmatpush.msra.mxu0 %v860
    %v862 = vand.u32 %v704, 4294901760
    %v863 = vsub.f32 %v704, %v862
    %v864 = vand.u32 %v863, 4294901760
    %v865 = vsub.f32 %v863, %v864
    %v866 = vand.u32 %v865, 4294901760
    %867 = vmatpush.msra.mxu0 %v866
    %v868 = vand.u32 %v703, 4294901760
    %v869 = vsub.f32 %v703, %v868
    %v870 = vand.u32 %v869, 4294901760
    %v871 = vsub.f32 %v869, %v870
    %v872 = vand.u32 %v871, 4294901760
    %873 = vmatpush.msra.mxu0 %v872
    %v874 = vand.u32 %v702, 4294901760
    %v875 = vsub.f32 %v702, %v874
    %v876 = vand.u32 %v875, 4294901760
    %v877 = vsub.f32 %v875, %v876
    %v878 = vand.u32 %v877, 4294901760
    %879 = vmatpush.msra.mxu0 %v878
    %v880 = vand.u32 %v712, 4294901760
    %881 = vmatmul.f32.gmra.mxu0 %v880
    %v882 = vpop.f32.mrf.mxu0
    %v883 = vadd.f32 %v766, %v882
    %v884 = vand.u32 %v715, 4294901760
    %885 = vmatmul.f32.gmra.mxu0 %v884
    %v886 = vpop.f32.mrf.mxu0
    %v887 = vadd.f32 %v774, %v886
    %v888 = vand.u32 %v718, 4294901760
    %889 = vmatmul.f32.gmra.mxu0 %v888
    %v890 = vpop.f32.mrf.mxu0
    %v891 = vadd.f32 %v782, %v890
    %v892 = vand.u32 %v721, 4294901760
    %893 = vmatmul.f32.gmra.mxu0 %v892
    %v894 = vpop.f32.mrf.mxu0
    %v895 = vadd.f32 %v790, %v894
    %v896 = vand.u32 %v724, 4294901760
    %897 = vmatmul.f32.gmra.mxu0 %v896
    %v898 = vpop.f32.mrf.mxu0
    %v899 = vadd.f32 %v798, %v898
    %v900 = vand.u32 %v727, 4294901760
    %901 = vmatmul.f32.gmra.mxu0 %v900
    %v902 = vpop.f32.mrf.mxu0
    %v903 = vadd.f32 %v806, %v902
    %v904 = vand.u32 %v730, 4294901760
    %905 = vmatmul.f32.gmra.mxu0 %v904
    %v906 = vpop.f32.mrf.mxu0
    %v907 = vadd.f32 %v814, %v906
    %v908 = vand.u32 %v733, 4294901760
    %909 = vmatmul.f32.gmra.mxu0 %v908
    %v910 = vpop.f32.mrf.mxu0
    %v911 = vadd.f32 %v822, %v910
    %912 = vdwg.mxu0
    %913 = vmatpush.msra.mxu0 0.0
    %914 = vmatpush.msra.mxu0 0.0
    %915 = vmatpush.msra.mxu0 0.0
    %916 = vmatpush.msra.mxu0 0.0
    %917 = vmatpush.msra.mxu0 0.0
    %918 = vmatpush.msra.mxu0 0.0
    %919 = vmatpush.msra.mxu0 0.0
    %920 = vmatpush.msra.mxu0 0.0
    %v921 = vand.u32 %v709, 4294901760
    %v922 = vsub.f32 %v709, %v921
    %923 = vmatpush.msra.mxu0 %v922
    %v924 = vand.u32 %v708, 4294901760
    %v925 = vsub.f32 %v708, %v924
    %926 = vmatpush.msra.mxu0 %v925
    %v927 = vand.u32 %v707, 4294901760
    %v928 = vsub.f32 %v707, %v927
    %929 = vmatpush.msra.mxu0 %v928
    %v930 = vand.u32 %v706, 4294901760
    %v931 = vsub.f32 %v706, %v930
    %932 = vmatpush.msra.mxu0 %v931
    %v933 = vand.u32 %v705, 4294901760
    %v934 = vsub.f32 %v705, %v933
    %935 = vmatpush.msra.mxu0 %v934
    %v936 = vand.u32 %v704, 4294901760
    %v937 = vsub.f32 %v704, %v936
    %938 = vmatpush.msra.mxu0 %v937
    %v939 = vand.u32 %v703, 4294901760
    %v940 = vsub.f32 %v703, %v939
    %941 = vmatpush.msra.mxu0 %v940
    %v942 = vand.u32 %v702, 4294901760
    %v943 = vsub.f32 %v702, %v942
    %944 = vmatpush.msra.mxu0 %v943
    %v945 = vand.u32 %v712, 4294901760
    %v946 = vsub.f32 %v712, %v945
    %947 = vmatmul.f32.gmra.mxu0 %v946
    %v948 = vpop.f32.mrf.mxu0
    %v949 = vadd.f32 %v883, %v948
    %v950 = vand.u32 %v715, 4294901760
    %v951 = vsub.f32 %v715, %v950
    %952 = vmatmul.f32.gmra.mxu0 %v951
    %v953 = vpop.f32.mrf.mxu0
    %v954 = vadd.f32 %v887, %v953
    %v955 = vand.u32 %v718, 4294901760
    %v956 = vsub.f32 %v718, %v955
    %957 = vmatmul.f32.gmra.mxu0 %v956
    %v958 = vpop.f32.mrf.mxu0
    %v959 = vadd.f32 %v891, %v958
    %v960 = vand.u32 %v721, 4294901760
    %v961 = vsub.f32 %v721, %v960
    %962 = vmatmul.f32.gmra.mxu0 %v961
    %v963 = vpop.f32.mrf.mxu0
    %v964 = vadd.f32 %v895, %v963
    %v965 = vand.u32 %v724, 4294901760
    %v966 = vsub.f32 %v724, %v965
    %967 = vmatmul.f32.gmra.mxu0 %v966
    %v968 = vpop.f32.mrf.mxu0
    %v969 = vadd.f32 %v899, %v968
    %v970 = vand.u32 %v727, 4294901760
    %v971 = vsub.f32 %v727, %v970
    %972 = vmatmul.f32.gmra.mxu0 %v971
    %v973 = vpop.f32.mrf.mxu0
    %v974 = vadd.f32 %v903, %v973
    %v975 = vand.u32 %v730, 4294901760
    %v976 = vsub.f32 %v730, %v975
    %977 = vmatmul.f32.gmra.mxu0 %v976
    %v978 = vpop.f32.mrf.mxu0
    %v979 = vadd.f32 %v907, %v978
    %v980 = vand.u32 %v733, 4294901760
    %v981 = vsub.f32 %v733, %v980
    %982 = vmatmul.f32.gmra.mxu0 %v981
    %v983 = vpop.f32.mrf.mxu0
    %v984 = vadd.f32 %v911, %v983
    %985 = vdwg.mxu0
    %986 = vmatpush.msra.mxu0 0.0
    %987 = vmatpush.msra.mxu0 0.0
    %988 = vmatpush.msra.mxu0 0.0
    %989 = vmatpush.msra.mxu0 0.0
    %990 = vmatpush.msra.mxu0 0.0
    %991 = vmatpush.msra.mxu0 0.0
    %992 = vmatpush.msra.mxu0 0.0
    %993 = vmatpush.msra.mxu0 0.0
    %v994 = vand.u32 %v709, 4294901760
    %995 = vmatpush.msra.mxu0 %v994
    %v996 = vand.u32 %v708, 4294901760
    %997 = vmatpush.msra.mxu0 %v996
    %v998 = vand.u32 %v707, 4294901760
    %999 = vmatpush.msra.mxu0 %v998
    %v1000 = vand.u32 %v706, 4294901760
    %1001 = vmatpush.msra.mxu0 %v1000
    %v1002 = vand.u32 %v705, 4294901760
    %1003 = vmatpush.msra.mxu0 %v1002
    %v1004 = vand.u32 %v704, 4294901760
    %1005 = vmatpush.msra.mxu0 %v1004
    %v1006 = vand.u32 %v703, 4294901760
    %1007 = vmatpush.msra.mxu0 %v1006
    %v1008 = vand.u32 %v702, 4294901760
    %1009 = vmatpush.msra.mxu0 %v1008
    %v1010 = vand.u32 %v712, 4294901760
    %v1011 = vsub.f32 %v712, %v1010
    %v1012 = vand.u32 %v1011, 4294901760
    %1013 = vmatmul.f32.gmra.mxu0 %v1012
    %v1014 = vpop.f32.mrf.mxu0
    %v1015 = vadd.f32 %v949, %v1014
    %v1016 = vand.u32 %v715, 4294901760
    %v1017 = vsub.f32 %v715, %v1016
    %v1018 = vand.u32 %v1017, 4294901760
    %1019 = vmatmul.f32.gmra.mxu0 %v1018
    %v1020 = vpop.f32.mrf.mxu0
    %v1021 = vadd.f32 %v954, %v1020
    %v1022 = vand.u32 %v718, 4294901760
    %v1023 = vsub.f32 %v718, %v1022
    %v1024 = vand.u32 %v1023, 4294901760
    %1025 = vmatmul.f32.gmra.mxu0 %v1024
    %v1026 = vpop.f32.mrf.mxu0
    %v1027 = vadd.f32 %v959, %v1026
    %v1028 = vand.u32 %v721, 4294901760
    %v1029 = vsub.f32 %v721, %v1028
    %v1030 = vand.u32 %v1029, 4294901760
    %1031 = vmatmul.f32.gmra.mxu0 %v1030
    %v1032 = vpop.f32.mrf.mxu0
    %v1033 = vadd.f32 %v964, %v1032
    %v1034 = vand.u32 %v724, 4294901760
    %v1035 = vsub.f32 %v724, %v1034
    %v1036 = vand.u32 %v1035, 4294901760
    %1037 = vmatmul.f32.gmra.mxu0 %v1036
    %v1038 = vpop.f32.mrf.mxu0
    %v1039 = vadd.f32 %v969, %v1038
    %v1040 = vand.u32 %v727, 4294901760
    %v1041 = vsub.f32 %v727, %v1040
    %v1042 = vand.u32 %v1041, 4294901760
    %1043 = vmatmul.f32.gmra.mxu0 %v1042
    %v1044 = vpop.f32.mrf.mxu0
    %v1045 = vadd.f32 %v974, %v1044
    %v1046 = vand.u32 %v730, 4294901760
    %v1047 = vsub.f32 %v730, %v1046
    %v1048 = vand.u32 %v1047, 4294901760
    %1049 = vmatmul.f32.gmra.mxu0 %v1048
    %v1050 = vpop.f32.mrf.mxu0
    %v1051 = vadd.f32 %v979, %v1050
    %v1052 = vand.u32 %v733, 4294901760
    %v1053 = vsub.f32 %v733, %v1052
    %v1054 = vand.u32 %v1053, 4294901760
    %1055 = vmatmul.f32.gmra.mxu0 %v1054
    %v1056 = vpop.f32.mrf.mxu0
    %v1057 = vadd.f32 %v984, %v1056
    %1058 = vdwg.mxu0
    %1059 = vmatpush.msra.mxu0 0.0
    %1060 = vmatpush.msra.mxu0 0.0
    %1061 = vmatpush.msra.mxu0 0.0
    %1062 = vmatpush.msra.mxu0 0.0
    %1063 = vmatpush.msra.mxu0 0.0
    %1064 = vmatpush.msra.mxu0 0.0
    %1065 = vmatpush.msra.mxu0 0.0
    %1066 = vmatpush.msra.mxu0 0.0
    %v1067 = vand.u32 %v709, 4294901760
    %v1068 = vsub.f32 %v709, %v1067
    %v1069 = vand.u32 %v1068, 4294901760
    %1070 = vmatpush.msra.mxu0 %v1069
    %v1071 = vand.u32 %v708, 4294901760
    %v1072 = vsub.f32 %v708, %v1071
    %v1073 = vand.u32 %v1072, 4294901760
    %1074 = vmatpush.msra.mxu0 %v1073
    %v1075 = vand.u32 %v707, 4294901760
    %v1076 = vsub.f32 %v707, %v1075
    %v1077 = vand.u32 %v1076, 4294901760
    %1078 = vmatpush.msra.mxu0 %v1077
    %v1079 = vand.u32 %v706, 4294901760
    %v1080 = vsub.f32 %v706, %v1079
    %v1081 = vand.u32 %v1080, 4294901760
    %1082 = vmatpush.msra.mxu0 %v1081
    %v1083 = vand.u32 %v705, 4294901760
    %v1084 = vsub.f32 %v705, %v1083
    %v1085 = vand.u32 %v1084, 4294901760
    %1086 = vmatpush.msra.mxu0 %v1085
    %v1087 = vand.u32 %v704, 4294901760
    %v1088 = vsub.f32 %v704, %v1087
    %v1089 = vand.u32 %v1088, 4294901760
    %1090 = vmatpush.msra.mxu0 %v1089
    %v1091 = vand.u32 %v703, 4294901760
    %v1092 = vsub.f32 %v703, %v1091
    %v1093 = vand.u32 %v1092, 4294901760
    %1094 = vmatpush.msra.mxu0 %v1093
    %v1095 = vand.u32 %v702, 4294901760
    %v1096 = vsub.f32 %v702, %v1095
    %v1097 = vand.u32 %v1096, 4294901760
    %1098 = vmatpush.msra.mxu0 %v1097
    %v1099 = vand.u32 %v712, 4294901760
    %1100 = vmatmul.f32.gmra.mxu0 %v1099
    %v1101 = vpop.f32.mrf.mxu0
    %v1102 = vadd.f32 %v1015, %v1101
    %v1103 = vand.u32 %v715, 4294901760
    %1104 = vmatmul.f32.gmra.mxu0 %v1103
    %v1105 = vpop.f32.mrf.mxu0
    %v1106 = vadd.f32 %v1021, %v1105
    %v1107 = vand.u32 %v718, 4294901760
    %1108 = vmatmul.f32.gmra.mxu0 %v1107
    %v1109 = vpop.f32.mrf.mxu0
    %v1110 = vadd.f32 %v1027, %v1109
    %v1111 = vand.u32 %v721, 4294901760
    %1112 = vmatmul.f32.gmra.mxu0 %v1111
    %v1113 = vpop.f32.mrf.mxu0
    %v1114 = vadd.f32 %v1033, %v1113
    %v1115 = vand.u32 %v724, 4294901760
    %1116 = vmatmul.f32.gmra.mxu0 %v1115
    %v1117 = vpop.f32.mrf.mxu0
    %v1118 = vadd.f32 %v1039, %v1117
    %v1119 = vand.u32 %v727, 4294901760
    %1120 = vmatmul.f32.gmra.mxu0 %v1119
    %v1121 = vpop.f32.mrf.mxu0
    %v1122 = vadd.f32 %v1045, %v1121
    %v1123 = vand.u32 %v730, 4294901760
    %1124 = vmatmul.f32.gmra.mxu0 %v1123
    %v1125 = vpop.f32.mrf.mxu0
    %v1126 = vadd.f32 %v1051, %v1125
    %v1127 = vand.u32 %v733, 4294901760
    %1128 = vmatmul.f32.gmra.mxu0 %v1127
    %v1129 = vpop.f32.mrf.mxu0
    %v1130 = vadd.f32 %v1057, %v1129
    %1131 = vdwg.mxu0
    %1132 = vmatpush.msra.mxu0 0.0
    %1133 = vmatpush.msra.mxu0 0.0
    %1134 = vmatpush.msra.mxu0 0.0
    %1135 = vmatpush.msra.mxu0 0.0
    %1136 = vmatpush.msra.mxu0 0.0
    %1137 = vmatpush.msra.mxu0 0.0
    %1138 = vmatpush.msra.mxu0 0.0
    %1139 = vmatpush.msra.mxu0 0.0
    %v1140 = vand.u32 %v709, 4294901760
    %1141 = vmatpush.msra.mxu0 %v1140
    %v1142 = vand.u32 %v708, 4294901760
    %1143 = vmatpush.msra.mxu0 %v1142
    %v1144 = vand.u32 %v707, 4294901760
    %1145 = vmatpush.msra.mxu0 %v1144
    %v1146 = vand.u32 %v706, 4294901760
    %1147 = vmatpush.msra.mxu0 %v1146
    %v1148 = vand.u32 %v705, 4294901760
    %1149 = vmatpush.msra.mxu0 %v1148
    %v1150 = vand.u32 %v704, 4294901760
    %1151 = vmatpush.msra.mxu0 %v1150
    %v1152 = vand.u32 %v703, 4294901760
    %1153 = vmatpush.msra.mxu0 %v1152
    %v1154 = vand.u32 %v702, 4294901760
    %1155 = vmatpush.msra.mxu0 %v1154
    %v1156 = vand.u32 %v712, 4294901760
    %1157 = vmatmul.f32.gmra.mxu0 %v1156
    %v1158 = vpop.f32.mrf.mxu0
    %v1159 = vadd.f32 %v1102, %v1158
    %v1160 = vand.u32 %v715, 4294901760
    %1161 = vmatmul.f32.gmra.mxu0 %v1160
    %v1162 = vpop.f32.mrf.mxu0
    %v1163 = vadd.f32 %v1106, %v1162
    %v1164 = vand.u32 %v718, 4294901760
    %1165 = vmatmul.f32.gmra.mxu0 %v1164
    %v1166 = vpop.f32.mrf.mxu0
    %v1167 = vadd.f32 %v1110, %v1166
    %v1168 = vand.u32 %v721, 4294901760
    %1169 = vmatmul.f32.gmra.mxu0 %v1168
    %v1170 = vpop.f32.mrf.mxu0
    %v1171 = vadd.f32 %v1114, %v1170
    %v1172 = vand.u32 %v724, 4294901760
    %1173 = vmatmul.f32.gmra.mxu0 %v1172
    %v1174 = vpop.f32.mrf.mxu0
    %v1175 = vadd.f32 %v1118, %v1174
    %v1176 = vand.u32 %v727, 4294901760
    %1177 = vmatmul.f32.gmra.mxu0 %v1176
    %v1178 = vpop.f32.mrf.mxu0
    %v1179 = vadd.f32 %v1122, %v1178
    %v1180 = vand.u32 %v730, 4294901760
    %1181 = vmatmul.f32.gmra.mxu0 %v1180
    %v1182 = vpop.f32.mrf.mxu0
    %v1183 = vadd.f32 %v1126, %v1182
    %v1184 = vand.u32 %v733, 4294901760
    %1185 = vmatmul.f32.gmra.mxu0 %v1184
    %v1186 = vpop.f32.mrf.mxu0
    %v1187 = vadd.f32 %v1130, %v1186
    %1188 = vdwg.mxu0
    %v1189 = vfloor.f32 %v1159
    %v1190 = vfloor.f32 %v1163
    %v1191 = vfloor.f32 %v1167
    %v1192 = vfloor.f32 %v1171
    %v1193 = vfloor.f32 %v1175
    %v1194 = vfloor.f32 %v1179
    %v1195 = vfloor.f32 %v1183
    %v1196 = vfloor.f32 %v1187
    %vm1197 = vcmask 31744
    %v1198 = vsel %vm1197, %v1189, -inf
    %v1199 = vrot.slane %v1198, 4
    %v1200 = vmax.f32 %v1198, %v1199
    %v1201 = vrot.slane %v1200, 2
    %v1202 = vmax.f32 %v1200, %v1201
    %v1203 = vrot.slane %v1202, 1
    %v1204 = vmax.f32 %v1202, %v1203
    %v1205 = vsel %vm1197, %v1190, -inf
    %v1206 = vrot.slane %v1205, 4
    %v1207 = vmax.f32 %v1205, %v1206
    %v1208 = vrot.slane %v1207, 2
    %v1209 = vmax.f32 %v1207, %v1208
    %v1210 = vrot.slane %v1209, 1
    %v1211 = vmax.f32 %v1209, %v1210
    %v1212 = vsel %vm1197, %v1191, -inf
    %v1213 = vrot.slane %v1212, 4
    %v1214 = vmax.f32 %v1212, %v1213
    %v1215 = vrot.slane %v1214, 2
    %v1216 = vmax.f32 %v1214, %v1215
    %v1217 = vrot.slane %v1216, 1
    %v1218 = vmax.f32 %v1216, %v1217
    %v1219 = vsel %vm1197, %v1192, -inf
    %v1220 = vrot.slane %v1219, 4
    %v1221 = vmax.f32 %v1219, %v1220
    %v1222 = vrot.slane %v1221, 2
    %v1223 = vmax.f32 %v1221, %v1222
    %v1224 = vrot.slane %v1223, 1
    %v1225 = vmax.f32 %v1223, %v1224
    %v1226 = vsel %vm1197, %v1193, -inf
    %v1227 = vrot.slane %v1226, 4
    %v1228 = vmax.f32 %v1226, %v1227
    %v1229 = vrot.slane %v1228, 2
    %v1230 = vmax.f32 %v1228, %v1229
    %v1231 = vrot.slane %v1230, 1
    %v1232 = vmax.f32 %v1230, %v1231
    %v1233 = vsel %vm1197, %v1194, -inf
    %v1234 = vrot.slane %v1233, 4
    %v1235 = vmax.f32 %v1233, %v1234
    %v1236 = vrot.slane %v1235, 2
    %v1237 = vmax.f32 %v1235, %v1236
    %v1238 = vrot.slane %v1237, 1
    %v1239 = vmax.f32 %v1237, %v1238
    %v1240 = vsel %vm1197, %v1195, -inf
    %v1241 = vrot.slane %v1240, 4
    %v1242 = vmax.f32 %v1240, %v1241
    %v1243 = vrot.slane %v1242, 2
    %v1244 = vmax.f32 %v1242, %v1243
    %v1245 = vrot.slane %v1244, 1
    %v1246 = vmax.f32 %v1244, %v1245
    %v1247 = vsel %vm1197, %v1196, -inf
    %v1248 = vrot.slane %v1247, 4
    %v1249 = vmax.f32 %v1247, %v1248
    %v1250 = vrot.slane %v1249, 2
    %v1251 = vmax.f32 %v1249, %v1250
    %v1252 = vrot.slane %v1251, 1
    %v1253 = vmax.f32 %v1251, %v1252
    %v1254 = vsub.f32 %v1189, %v1204
    %v1255 = vsub.f32 %v1190, %v1211
    %v1256 = vsub.f32 %v1191, %v1218
    %v1257 = vsub.f32 %v1192, %v1225
    %v1258 = vsub.f32 %v1193, %v1232
    %v1259 = vsub.f32 %v1194, %v1239
    %v1260 = vsub.f32 %v1195, %v1246
    %v1261 = vsub.f32 %v1196, %v1253
    %v1262 = vmul.f32 %v1254, 1.442695
    %v1263 = vpow.pop %v1262
    %v1264 = vmul.f32 %v1255, 1.442695
    %v1265 = vpow.pop %v1264
    %v1266 = vmul.f32 %v1256, 1.442695
    %v1267 = vpow.pop %v1266
    %v1268 = vmul.f32 %v1257, 1.442695
    %v1269 = vpow.pop %v1268
    %v1270 = vmul.f32 %v1258, 1.442695
    %v1271 = vpow.pop %v1270
    %v1272 = vmul.f32 %v1259, 1.442695
    %v1273 = vpow.pop %v1272
    %v1274 = vmul.f32 %v1260, 1.442695
    %v1275 = vpow.pop %v1274
    %v1276 = vmul.f32 %v1261, 1.442695
    %v1277 = vpow.pop %v1276
    %v1278 = vsel %vm1197, %v1263, 0.0
    %v1279 = vrot.slane %v1278, 4
    %v1280 = vadd.f32 %v1278, %v1279
    %v1281 = vrot.slane %v1280, 2
    %v1282 = vadd.f32 %v1280, %v1281
    %v1283 = vrot.slane %v1282, 1
    %v1284 = vadd.f32 %v1282, %v1283
    %v1285 = vsel %vm1197, %v1265, 0.0
    %v1286 = vrot.slane %v1285, 4
    %v1287 = vadd.f32 %v1285, %v1286
    %v1288 = vrot.slane %v1287, 2
    %v1289 = vadd.f32 %v1287, %v1288
    %v1290 = vrot.slane %v1289, 1
    %v1291 = vadd.f32 %v1289, %v1290
    %v1292 = vsel %vm1197, %v1267, 0.0
    %v1293 = vrot.slane %v1292, 4
    %v1294 = vadd.f32 %v1292, %v1293
    %v1295 = vrot.slane %v1294, 2
    %v1296 = vadd.f32 %v1294, %v1295
    %v1297 = vrot.slane %v1296, 1
    %v1298 = vadd.f32 %v1296, %v1297
    %v1299 = vsel %vm1197, %v1269, 0.0
    %v1300 = vrot.slane %v1299, 4
    %v1301 = vadd.f32 %v1299, %v1300
    %v1302 = vrot.slane %v1301, 2
    %v1303 = vadd.f32 %v1301, %v1302
    %v1304 = vrot.slane %v1303, 1
    %v1305 = vadd.f32 %v1303, %v1304
    %v1306 = vsel %vm1197, %v1271, 0.0
    %v1307 = vrot.slane %v1306, 4
    %v1308 = vadd.f32 %v1306, %v1307
    %v1309 = vrot.slane %v1308, 2
    %v1310 = vadd.f32 %v1308, %v1309
    %v1311 = vrot.slane %v1310, 1
    %v1312 = vadd.f32 %v1310, %v1311
    %v1313 = vsel %vm1197, %v1273, 0.0
    %v1314 = vrot.slane %v1313, 4
    %v1315 = vadd.f32 %v1313, %v1314
    %v1316 = vrot.slane %v1315, 2
    %v1317 = vadd.f32 %v1315, %v1316
    %v1318 = vrot.slane %v1317, 1
    %v1319 = vadd.f32 %v1317, %v1318
    %v1320 = vsel %vm1197, %v1275, 0.0
    %v1321 = vrot.slane %v1320, 4
    %v1322 = vadd.f32 %v1320, %v1321
    %v1323 = vrot.slane %v1322, 2
    %v1324 = vadd.f32 %v1322, %v1323
    %v1325 = vrot.slane %v1324, 1
    %v1326 = vadd.f32 %v1324, %v1325
    %v1327 = vsel %vm1197, %v1277, 0.0
    %v1328 = vrot.slane %v1327, 4
    %v1329 = vadd.f32 %v1327, %v1328
    %v1330 = vrot.slane %v1329, 2
    %v1331 = vadd.f32 %v1329, %v1330
    %v1332 = vrot.slane %v1331, 1
    %v1333 = vadd.f32 %v1331, %v1332
    %v1334 = vrcp.pop %v1284
    %v1335 = vmul.f32 %v1284, %v1334
    %v1336 = vsub.f32 1.0, %v1335
    %v1337 = vmul.f32 %v1334, %v1336
    %v1338 = vadd.f32 %v1334, %v1337
    %vm1339 = vweird.f32 %v1284
    %vm1340 = vweird.f32 %v1334
    %vm1341 = vmor %vm1339, %vm1340
    %v1342 = vsel %vm1341, %v1334, %v1338
    %v1343 = vand.u32 2147483647, %v1284
    %vm1344 = vcmp.eq.f32.partialorder %v1343, 8.507059e+37
    %v1345 = vand.u32 %v1284, 2147483648
    %v1346 = vor.u32 1.1754944e-38, %v1345
    %v1347 = vsel %vm1344, %v1346, %v1342
    %v1348 = vmul.f32 %v1263, %v1347
    %v1349 = vrcp.pop %v1291
    %v1350 = vmul.f32 %v1291, %v1349
    %v1351 = vsub.f32 1.0, %v1350
    %v1352 = vmul.f32 %v1349, %v1351
    %v1353 = vadd.f32 %v1349, %v1352
    %vm1354 = vweird.f32 %v1291
    %vm1355 = vweird.f32 %v1349
    %vm1356 = vmor %vm1354, %vm1355
    %v1357 = vsel %vm1356, %v1349, %v1353
    %v1358 = vand.u32 2147483647, %v1291
    %vm1359 = vcmp.eq.f32.partialorder %v1358, 8.507059e+37
    %v1360 = vand.u32 %v1291, 2147483648
    %v1361 = vor.u32 1.1754944e-38, %v1360
    %v1362 = vsel %vm1359, %v1361, %v1357
    %v1363 = vmul.f32 %v1265, %v1362
    %v1364 = vrcp.pop %v1298
    %v1365 = vmul.f32 %v1298, %v1364
    %v1366 = vsub.f32 1.0, %v1365
    %v1367 = vmul.f32 %v1364, %v1366
    %v1368 = vadd.f32 %v1364, %v1367
    %vm1369 = vweird.f32 %v1298
    %vm1370 = vweird.f32 %v1364
    %vm1371 = vmor %vm1369, %vm1370
    %v1372 = vsel %vm1371, %v1364, %v1368
    %v1373 = vand.u32 2147483647, %v1298
    %vm1374 = vcmp.eq.f32.partialorder %v1373, 8.507059e+37
    %v1375 = vand.u32 %v1298, 2147483648
    %v1376 = vor.u32 1.1754944e-38, %v1375
    %v1377 = vsel %vm1374, %v1376, %v1372
    %v1378 = vmul.f32 %v1267, %v1377
    %v1379 = vrcp.pop %v1305
    %v1380 = vmul.f32 %v1305, %v1379
    %v1381 = vsub.f32 1.0, %v1380
    %v1382 = vmul.f32 %v1379, %v1381
    %v1383 = vadd.f32 %v1379, %v1382
    %vm1384 = vweird.f32 %v1305
    %vm1385 = vweird.f32 %v1379
    %vm1386 = vmor %vm1384, %vm1385
    %v1387 = vsel %vm1386, %v1379, %v1383
    %v1388 = vand.u32 2147483647, %v1305
    %vm1389 = vcmp.eq.f32.partialorder %v1388, 8.507059e+37
    %v1390 = vand.u32 %v1305, 2147483648
    %v1391 = vor.u32 1.1754944e-38, %v1390
    %v1392 = vsel %vm1389, %v1391, %v1387
    %v1393 = vmul.f32 %v1269, %v1392
    %v1394 = vrcp.pop %v1312
    %v1395 = vmul.f32 %v1312, %v1394
    %v1396 = vsub.f32 1.0, %v1395
    %v1397 = vmul.f32 %v1394, %v1396
    %v1398 = vadd.f32 %v1394, %v1397
    %vm1399 = vweird.f32 %v1312
    %vm1400 = vweird.f32 %v1394
    %vm1401 = vmor %vm1399, %vm1400
    %v1402 = vsel %vm1401, %v1394, %v1398
    %v1403 = vand.u32 2147483647, %v1312
    %vm1404 = vcmp.eq.f32.partialorder %v1403, 8.507059e+37
    %v1405 = vand.u32 %v1312, 2147483648
    %v1406 = vor.u32 1.1754944e-38, %v1405
    %v1407 = vsel %vm1404, %v1406, %v1402
    %v1408 = vmul.f32 %v1271, %v1407
    %v1409 = vrcp.pop %v1319
    %v1410 = vmul.f32 %v1319, %v1409
    %v1411 = vsub.f32 1.0, %v1410
    %v1412 = vmul.f32 %v1409, %v1411
    %v1413 = vadd.f32 %v1409, %v1412
    %vm1414 = vweird.f32 %v1319
    %vm1415 = vweird.f32 %v1409
    %vm1416 = vmor %vm1414, %vm1415
    %v1417 = vsel %vm1416, %v1409, %v1413
    %v1418 = vand.u32 2147483647, %v1319
    %vm1419 = vcmp.eq.f32.partialorder %v1418, 8.507059e+37
    %v1420 = vand.u32 %v1319, 2147483648
    %v1421 = vor.u32 1.1754944e-38, %v1420
    %v1422 = vsel %vm1419, %v1421, %v1417
    %v1423 = vmul.f32 %v1273, %v1422
    %v1424 = vrcp.pop %v1326
    %v1425 = vmul.f32 %v1326, %v1424
    %v1426 = vsub.f32 1.0, %v1425
    %v1427 = vmul.f32 %v1424, %v1426
    %v1428 = vadd.f32 %v1424, %v1427
    %vm1429 = vweird.f32 %v1326
    %vm1430 = vweird.f32 %v1424
    %vm1431 = vmor %vm1429, %vm1430
    %v1432 = vsel %vm1431, %v1424, %v1428
    %v1433 = vand.u32 2147483647, %v1326
    %vm1434 = vcmp.eq.f32.partialorder %v1433, 8.507059e+37
    %v1435 = vand.u32 %v1326, 2147483648
    %v1436 = vor.u32 1.1754944e-38, %v1435
    %v1437 = vsel %vm1434, %v1436, %v1432
    %v1438 = vmul.f32 %v1275, %v1437
    %v1439 = vrcp.pop %v1333
    %v1440 = vmul.f32 %v1333, %v1439
    %v1441 = vsub.f32 1.0, %v1440
    %v1442 = vmul.f32 %v1439, %v1441
    %v1443 = vadd.f32 %v1439, %v1442
    %vm1444 = vweird.f32 %v1333
    %vm1445 = vweird.f32 %v1439
    %vm1446 = vmor %vm1444, %vm1445
    %v1447 = vsel %vm1446, %v1439, %v1443
    %v1448 = vand.u32 2147483647, %v1333
    %vm1449 = vcmp.eq.f32.partialorder %v1448, 8.507059e+37
    %v1450 = vand.u32 %v1333, 2147483648
    %v1451 = vor.u32 1.1754944e-38, %v1450
    %v1452 = vsel %vm1449, %v1451, %v1447
    %v1453 = vmul.f32 %v1277, %v1452
    %v1454 = vld [vmem:[%s7] sm:$0xf]
    %v1456 = vsel %vm1197, %v1348, 0
    %v1459 = vsel %vm1197, %v1363, 0
    %v1462 = vsel %vm1197, %v1378, 0
    %v1465 = vsel %vm1197, %v1393, 0
    %v1468 = vsel %vm1197, %v1408, 0
    %v1471 = vsel %vm1197, %v1423, 0
    %v1474 = vsel %vm1197, %v1438, 0
    %v1477 = vsel %vm1197, %v1453, 0
    %vm1479 = vcmask 1043456
    %v1481 = vsel %vm1479, %v1454, 0
    %1483 = vmatpush.msra.mxu0 0.0
    %1484 = vmatpush.msra.mxu0 0.0
    %1485 = vmatpush.msra.mxu0 0.0
    %1486 = vmatpush.msra.mxu0 0.0
    %1487 = vmatpush.msra.mxu0 0.0
    %1488 = vmatpush.msra.mxu0 0.0
    %1489 = vmatpush.msra.mxu0 0.0
    %1490 = vmatpush.msra.mxu0 0.0
    %1491 = vmatpush.msra.mxu0 0.0
    %1492 = vmatpush.msra.mxu0 0.0
    %1493 = vmatpush.msra.mxu0 0.0
    %1494 = vmatpush.msra.mxu0 0.0
    %1495 = vmatpush.msra.mxu0 0.0
    %1496 = vmatpush.msra.mxu0 0.0
    %1497 = vmatpush.msra.mxu0 0.0
    %v1498 = vand.u32 %v1481, 4294901760
    %1499 = vmatpush.msra.mxu0 %v1498
    %v1500 = vand.u32 %v1456, 4294901760
    %v1501 = vsub.f32 %v1456, %v1500
    %v1502 = vand.u32 %v1501, 4294901760
    %v1503 = vsub.f32 %v1501, %v1502
    %v1504 = vand.u32 %v1503, 4294901760
    %1505 = vmatmul.f32.gmra.mxu0 %v1504
    %v1506 = vpop.f32.mrf.mxu0
    %v1507 = vadd.f32 0.0, %v1506
    %v1508 = vand.u32 %v1459, 4294901760
    %v1509 = vsub.f32 %v1459, %v1508
    %v1510 = vand.u32 %v1509, 4294901760
    %v1511 = vsub.f32 %v1509, %v1510
    %v1512 = vand.u32 %v1511, 4294901760
    %1513 = vmatmul.f32.gmra.mxu0 %v1512
    %v1514 = vpop.f32.mrf.mxu0
    %v1515 = vadd.f32 0.0, %v1514
    %v1516 = vand.u32 %v1462, 4294901760
    %v1517 = vsub.f32 %v1462, %v1516
    %v1518 = vand.u32 %v1517, 4294901760
    %v1519 = vsub.f32 %v1517, %v1518
    %v1520 = vand.u32 %v1519, 4294901760
    %1521 = vmatmul.f32.gmra.mxu0 %v1520
    %v1522 = vpop.f32.mrf.mxu0
    %v1523 = vadd.f32 0.0, %v1522
    %v1524 = vand.u32 %v1465, 4294901760
    %v1525 = vsub.f32 %v1465, %v1524
    %v1526 = vand.u32 %v1525, 4294901760
    %v1527 = vsub.f32 %v1525, %v1526
    %v1528 = vand.u32 %v1527, 4294901760
    %1529 = vmatmul.f32.gmra.mxu0 %v1528
    %v1530 = vpop.f32.mrf.mxu0
    %v1531 = vadd.f32 0.0, %v1530
    %v1532 = vand.u32 %v1468, 4294901760
    %v1533 = vsub.f32 %v1468, %v1532
    %v1534 = vand.u32 %v1533, 4294901760
    %v1535 = vsub.f32 %v1533, %v1534
    %v1536 = vand.u32 %v1535, 4294901760
    %1537 = vmatmul.f32.gmra.mxu0 %v1536
    %v1538 = vpop.f32.mrf.mxu0
    %v1539 = vadd.f32 0.0, %v1538
    %v1540 = vand.u32 %v1471, 4294901760
    %v1541 = vsub.f32 %v1471, %v1540
    %v1542 = vand.u32 %v1541, 4294901760
    %v1543 = vsub.f32 %v1541, %v1542
    %v1544 = vand.u32 %v1543, 4294901760
    %1545 = vmatmul.f32.gmra.mxu0 %v1544
    %v1546 = vpop.f32.mrf.mxu0
    %v1547 = vadd.f32 0.0, %v1546
    %v1548 = vand.u32 %v1474, 4294901760
    %v1549 = vsub.f32 %v1474, %v1548
    %v1550 = vand.u32 %v1549, 4294901760
    %v1551 = vsub.f32 %v1549, %v1550
    %v1552 = vand.u32 %v1551, 4294901760
    %1553 = vmatmul.f32.gmra.mxu0 %v1552
    %v1554 = vpop.f32.mrf.mxu0
    %v1555 = vadd.f32 0.0, %v1554
    %v1556 = vand.u32 %v1477, 4294901760
    %v1557 = vsub.f32 %v1477, %v1556
    %v1558 = vand.u32 %v1557, 4294901760
    %v1559 = vsub.f32 %v1557, %v1558
    %v1560 = vand.u32 %v1559, 4294901760
    %1561 = vmatmul.f32.gmra.mxu0 %v1560
    %v1562 = vpop.f32.mrf.mxu0
    %v1563 = vadd.f32 0.0, %v1562
    %1564 = vdwg.mxu0
    %1565 = vmatpush.msra.mxu0 0.0
    %1566 = vmatpush.msra.mxu0 0.0
    %1567 = vmatpush.msra.mxu0 0.0
    %1568 = vmatpush.msra.mxu0 0.0
    %1569 = vmatpush.msra.mxu0 0.0
    %1570 = vmatpush.msra.mxu0 0.0
    %1571 = vmatpush.msra.mxu0 0.0
    %1572 = vmatpush.msra.mxu0 0.0
    %1573 = vmatpush.msra.mxu0 0.0
    %1574 = vmatpush.msra.mxu0 0.0
    %1575 = vmatpush.msra.mxu0 0.0
    %1576 = vmatpush.msra.mxu0 0.0
    %1577 = vmatpush.msra.mxu0 0.0
    %1578 = vmatpush.msra.mxu0 0.0
    %1579 = vmatpush.msra.mxu0 0.0
    %v1580 = vand.u32 %v1481, 4294901760
    %v1581 = vsub.f32 %v1481, %v1580
    %v1582 = vand.u32 %v1581, 4294901760
    %v1583 = vsub.f32 %v1581, %v1582
    %v1584 = vand.u32 %v1583, 4294901760
    %1585 = vmatpush.msra.mxu0 %v1584
    %v1586 = vand.u32 %v1456, 4294901760
    %1587 = vmatmul.f32.gmra.mxu0 %v1586
    %v1588 = vpop.f32.mrf.mxu0
    %v1589 = vadd.f32 %v1507, %v1588
    %v1590 = vand.u32 %v1459, 4294901760
    %1591 = vmatmul.f32.gmra.mxu0 %v1590
    %v1592 = vpop.f32.mrf.mxu0
    %v1593 = vadd.f32 %v1515, %v1592
    %v1594 = vand.u32 %v1462, 4294901760
    %1595 = vmatmul.f32.gmra.mxu0 %v1594
    %v1596 = vpop.f32.mrf.mxu0
    %v1597 = vadd.f32 %v1523, %v1596
    %v1598 = vand.u32 %v1465, 4294901760
    %1599 = vmatmul.f32.gmra.mxu0 %v1598
    %v1600 = vpop.f32.mrf.mxu0
    %v1601 = vadd.f32 %v1531, %v1600
    %v1602 = vand.u32 %v1468, 4294901760
    %1603 = vmatmul.f32.gmra.mxu0 %v1602
    %v1604 = vpop.f32.mrf.mxu0
    %v1605 = vadd.f32 %v1539, %v1604
    %v1606 = vand.u32 %v1471, 4294901760
    %1607 = vmatmul.f32.gmra.mxu0 %v1606
    %v1608 = vpop.f32.mrf.mxu0
    %v1609 = vadd.f32 %v1547, %v1608
    %v1610 = vand.u32 %v1474, 4294901760
    %1611 = vmatmul.f32.gmra.mxu0 %v1610
    %v1612 = vpop.f32.mrf.mxu0
    %v1613 = vadd.f32 %v1555, %v1612
    %v1614 = vand.u32 %v1477, 4294901760
    %1615 = vmatmul.f32.gmra.mxu0 %v1614
    %v1616 = vpop.f32.mrf.mxu0
    %v1617 = vadd.f32 %v1563, %v1616
    %1618 = vdwg.mxu0
    %1619 = vmatpush.msra.mxu0 0.0
    %1620 = vmatpush.msra.mxu0 0.0
    %1621 = vmatpush.msra.mxu0 0.0
    %1622 = vmatpush.msra.mxu0 0.0
    %1623 = vmatpush.msra.mxu0 0.0
    %1624 = vmatpush.msra.mxu0 0.0
    %1625 = vmatpush.msra.mxu0 0.0
    %1626 = vmatpush.msra.mxu0 0.0
    %1627 = vmatpush.msra.mxu0 0.0
    %1628 = vmatpush.msra.mxu0 0.0
    %1629 = vmatpush.msra.mxu0 0.0
    %1630 = vmatpush.msra.mxu0 0.0
    %1631 = vmatpush.msra.mxu0 0.0
    %1632 = vmatpush.msra.mxu0 0.0
    %1633 = vmatpush.msra.mxu0 0.0
    %v1634 = vand.u32 %v1481, 4294901760
    %v1635 = vsub.f32 %v1481, %v1634
    %1636 = vmatpush.msra.mxu0 %v1635
    %v1637 = vand.u32 %v1456, 4294901760
    %v1638 = vsub.f32 %v1456, %v1637
    %1639 = vmatmul.f32.gmra.mxu0 %v1638
    %v1640 = vpop.f32.mrf.mxu0
    %v1641 = vadd.f32 %v1589, %v1640
    %v1642 = vand.u32 %v1459, 4294901760
    %v1643 = vsub.f32 %v1459, %v1642
    %1644 = vmatmul.f32.gmra.mxu0 %v1643
    %v1645 = vpop.f32.mrf.mxu0
    %v1646 = vadd.f32 %v1593, %v1645
    %v1647 = vand.u32 %v1462, 4294901760
    %v1648 = vsub.f32 %v1462, %v1647
    %1649 = vmatmul.f32.gmra.mxu0 %v1648
    %v1650 = vpop.f32.mrf.mxu0
    %v1651 = vadd.f32 %v1597, %v1650
    %v1652 = vand.u32 %v1465, 4294901760
    %v1653 = vsub.f32 %v1465, %v1652
    %1654 = vmatmul.f32.gmra.mxu0 %v1653
    %v1655 = vpop.f32.mrf.mxu0
    %v1656 = vadd.f32 %v1601, %v1655
    %v1657 = vand.u32 %v1468, 4294901760
    %v1658 = vsub.f32 %v1468, %v1657
    %1659 = vmatmul.f32.gmra.mxu0 %v1658
    %v1660 = vpop.f32.mrf.mxu0
    %v1661 = vadd.f32 %v1605, %v1660
    %v1662 = vand.u32 %v1471, 4294901760
    %v1663 = vsub.f32 %v1471, %v1662
    %1664 = vmatmul.f32.gmra.mxu0 %v1663
    %v1665 = vpop.f32.mrf.mxu0
    %v1666 = vadd.f32 %v1609, %v1665
    %v1667 = vand.u32 %v1474, 4294901760
    %v1668 = vsub.f32 %v1474, %v1667
    %1669 = vmatmul.f32.gmra.mxu0 %v1668
    %v1670 = vpop.f32.mrf.mxu0
    %v1671 = vadd.f32 %v1613, %v1670
    %v1672 = vand.u32 %v1477, 4294901760
    %v1673 = vsub.f32 %v1477, %v1672
    %1674 = vmatmul.f32.gmra.mxu0 %v1673
    %v1675 = vpop.f32.mrf.mxu0
    %v1676 = vadd.f32 %v1617, %v1675
    %1677 = vdwg.mxu0
    %1678 = vmatpush.msra.mxu0 0.0
    %1679 = vmatpush.msra.mxu0 0.0
    %1680 = vmatpush.msra.mxu0 0.0
    %1681 = vmatpush.msra.mxu0 0.0
    %1682 = vmatpush.msra.mxu0 0.0
    %1683 = vmatpush.msra.mxu0 0.0
    %1684 = vmatpush.msra.mxu0 0.0
    %1685 = vmatpush.msra.mxu0 0.0
    %1686 = vmatpush.msra.mxu0 0.0
    %1687 = vmatpush.msra.mxu0 0.0
    %1688 = vmatpush.msra.mxu0 0.0
    %1689 = vmatpush.msra.mxu0 0.0
    %1690 = vmatpush.msra.mxu0 0.0
    %1691 = vmatpush.msra.mxu0 0.0
    %1692 = vmatpush.msra.mxu0 0.0
    %v1693 = vand.u32 %v1481, 4294901760
    %1694 = vmatpush.msra.mxu0 %v1693
    %v1695 = vand.u32 %v1456, 4294901760
    %v1696 = vsub.f32 %v1456, %v1695
    %v1697 = vand.u32 %v1696, 4294901760
    %1698 = vmatmul.f32.gmra.mxu0 %v1697
    %v1699 = vpop.f32.mrf.mxu0
    %v1700 = vadd.f32 %v1641, %v1699
    %v1701 = vand.u32 %v1459, 4294901760
    %v1702 = vsub.f32 %v1459, %v1701
    %v1703 = vand.u32 %v1702, 4294901760
    %1704 = vmatmul.f32.gmra.mxu0 %v1703
    %v1705 = vpop.f32.mrf.mxu0
    %v1706 = vadd.f32 %v1646, %v1705
    %v1707 = vand.u32 %v1462, 4294901760
    %v1708 = vsub.f32 %v1462, %v1707
    %v1709 = vand.u32 %v1708, 4294901760
    %1710 = vmatmul.f32.gmra.mxu0 %v1709
    %v1711 = vpop.f32.mrf.mxu0
    %v1712 = vadd.f32 %v1651, %v1711
    %v1713 = vand.u32 %v1465, 4294901760
    %v1714 = vsub.f32 %v1465, %v1713
    %v1715 = vand.u32 %v1714, 4294901760
    %1716 = vmatmul.f32.gmra.mxu0 %v1715
    %v1717 = vpop.f32.mrf.mxu0
    %v1718 = vadd.f32 %v1656, %v1717
    %v1719 = vand.u32 %v1468, 4294901760
    %v1720 = vsub.f32 %v1468, %v1719
    %v1721 = vand.u32 %v1720, 4294901760
    %1722 = vmatmul.f32.gmra.mxu0 %v1721
    %v1723 = vpop.f32.mrf.mxu0
    %v1724 = vadd.f32 %v1661, %v1723
    %v1725 = vand.u32 %v1471, 4294901760
    %v1726 = vsub.f32 %v1471, %v1725
    %v1727 = vand.u32 %v1726, 4294901760
    %1728 = vmatmul.f32.gmra.mxu0 %v1727
    %v1729 = vpop.f32.mrf.mxu0
    %v1730 = vadd.f32 %v1666, %v1729
    %v1731 = vand.u32 %v1474, 4294901760
    %v1732 = vsub.f32 %v1474, %v1731
    %v1733 = vand.u32 %v1732, 4294901760
    %1734 = vmatmul.f32.gmra.mxu0 %v1733
    %v1735 = vpop.f32.mrf.mxu0
    %v1736 = vadd.f32 %v1671, %v1735
    %v1737 = vand.u32 %v1477, 4294901760
    %v1738 = vsub.f32 %v1477, %v1737
    %v1739 = vand.u32 %v1738, 4294901760
    %1740 = vmatmul.f32.gmra.mxu0 %v1739
    %v1741 = vpop.f32.mrf.mxu0
    %v1742 = vadd.f32 %v1676, %v1741
    %1743 = vdwg.mxu0
    %1744 = vmatpush.msra.mxu0 0.0
    %1745 = vmatpush.msra.mxu0 0.0
    %1746 = vmatpush.msra.mxu0 0.0
    %1747 = vmatpush.msra.mxu0 0.0
    %1748 = vmatpush.msra.mxu0 0.0
    %1749 = vmatpush.msra.mxu0 0.0
    %1750 = vmatpush.msra.mxu0 0.0
    %1751 = vmatpush.msra.mxu0 0.0
    %1752 = vmatpush.msra.mxu0 0.0
    %1753 = vmatpush.msra.mxu0 0.0
    %1754 = vmatpush.msra.mxu0 0.0
    %1755 = vmatpush.msra.mxu0 0.0
    %1756 = vmatpush.msra.mxu0 0.0
    %1757 = vmatpush.msra.mxu0 0.0
    %1758 = vmatpush.msra.mxu0 0.0
    %v1759 = vand.u32 %v1481, 4294901760
    %v1760 = vsub.f32 %v1481, %v1759
    %v1761 = vand.u32 %v1760, 4294901760
    %1762 = vmatpush.msra.mxu0 %v1761
    %v1763 = vand.u32 %v1456, 4294901760
    %1764 = vmatmul.f32.gmra.mxu0 %v1763
    %v1765 = vpop.f32.mrf.mxu0
    %v1766 = vadd.f32 %v1700, %v1765
    %v1767 = vand.u32 %v1459, 4294901760
    %1768 = vmatmul.f32.gmra.mxu0 %v1767
    %v1769 = vpop.f32.mrf.mxu0
    %v1770 = vadd.f32 %v1706, %v1769
    %v1771 = vand.u32 %v1462, 4294901760
    %1772 = vmatmul.f32.gmra.mxu0 %v1771
    %v1773 = vpop.f32.mrf.mxu0
    %v1774 = vadd.f32 %v1712, %v1773
    %v1775 = vand.u32 %v1465, 4294901760
    %1776 = vmatmul.f32.gmra.mxu0 %v1775
    %v1777 = vpop.f32.mrf.mxu0
    %v1778 = vadd.f32 %v1718, %v1777
    %v1779 = vand.u32 %v1468, 4294901760
    %1780 = vmatmul.f32.gmra.mxu0 %v1779
    %v1781 = vpop.f32.mrf.mxu0
    %v1782 = vadd.f32 %v1724, %v1781
    %v1783 = vand.u32 %v1471, 4294901760
    %1784 = vmatmul.f32.gmra.mxu0 %v1783
    %v1785 = vpop.f32.mrf.mxu0
    %v1786 = vadd.f32 %v1730, %v1785
    %v1787 = vand.u32 %v1474, 4294901760
    %1788 = vmatmul.f32.gmra.mxu0 %v1787
    %v1789 = vpop.f32.mrf.mxu0
    %v1790 = vadd.f32 %v1736, %v1789
    %v1791 = vand.u32 %v1477, 4294901760
    %1792 = vmatmul.f32.gmra.mxu0 %v1791
    %v1793 = vpop.f32.mrf.mxu0
    %v1794 = vadd.f32 %v1742, %v1793
    %1795 = vdwg.mxu0
    %1796 = vmatpush.msra.mxu0 0.0
    %1797 = vmatpush.msra.mxu0 0.0
    %1798 = vmatpush.msra.mxu0 0.0
    %1799 = vmatpush.msra.mxu0 0.0
    %1800 = vmatpush.msra.mxu0 0.0
    %1801 = vmatpush.msra.mxu0 0.0
    %1802 = vmatpush.msra.mxu0 0.0
    %1803 = vmatpush.msra.mxu0 0.0
    %1804 = vmatpush.msra.mxu0 0.0
    %1805 = vmatpush.msra.mxu0 0.0
    %1806 = vmatpush.msra.mxu0 0.0
    %1807 = vmatpush.msra.mxu0 0.0
    %1808 = vmatpush.msra.mxu0 0.0
    %1809 = vmatpush.msra.mxu0 0.0
    %1810 = vmatpush.msra.mxu0 0.0
    %v1811 = vand.u32 %v1481, 4294901760
    %1812 = vmatpush.msra.mxu0 %v1811
    %v1813 = vand.u32 %v1456, 4294901760
    %1814 = vmatmul.f32.gmra.mxu0 %v1813
    %v1815 = vpop.f32.mrf.mxu0
    %v1816 = vadd.f32 %v1766, %v1815
    %v1817 = vand.u32 %v1459, 4294901760
    %1818 = vmatmul.f32.gmra.mxu0 %v1817
    %v1819 = vpop.f32.mrf.mxu0
    %v1820 = vadd.f32 %v1770, %v1819
    %v1821 = vand.u32 %v1462, 4294901760
    %1822 = vmatmul.f32.gmra.mxu0 %v1821
    %v1823 = vpop.f32.mrf.mxu0
    %v1824 = vadd.f32 %v1774, %v1823
    %v1825 = vand.u32 %v1465, 4294901760
    %1826 = vmatmul.f32.gmra.mxu0 %v1825
    %v1827 = vpop.f32.mrf.mxu0
    %v1828 = vadd.f32 %v1778, %v1827
    %v1829 = vand.u32 %v1468, 4294901760
    %1830 = vmatmul.f32.gmra.mxu0 %v1829
    %v1831 = vpop.f32.mrf.mxu0
    %v1832 = vadd.f32 %v1782, %v1831
    %v1833 = vand.u32 %v1471, 4294901760
    %1834 = vmatmul.f32.gmra.mxu0 %v1833
    %v1835 = vpop.f32.mrf.mxu0
    %v1836 = vadd.f32 %v1786, %v1835
    %v1837 = vand.u32 %v1474, 4294901760
    %1838 = vmatmul.f32.gmra.mxu0 %v1837
    %v1839 = vpop.f32.mrf.mxu0
    %v1840 = vadd.f32 %v1790, %v1839
    %v1841 = vand.u32 %v1477, 4294901760
    %1842 = vmatmul.f32.gmra.mxu0 %v1841
    %v1843 = vpop.f32.mrf.mxu0
    %v1844 = vadd.f32 %v1794, %v1843
    %1845 = vdwg.mxu0
    %v1846 = vmul.f32 %v1816, %v640
    %v1847 = vmul.f32 %v1820, %v644
    %v1848 = vmul.f32 %v1824, %v648
    %v1849 = vmul.f32 %v1828, %v652
    %v1850 = vmul.f32 %v1832, %v656
    %v1851 = vmul.f32 %v1836, %v660
    %v1852 = vmul.f32 %v1840, %v664
    %v1853 = vmul.f32 %v1844, %v668
    %v1854 = vsel %vm710, %v1846, 0.0
    %v1855 = vrot.slane %v1854, 4
    %v1856 = vadd.f32 %v1854, %v1855
    %v1857 = vrot.slane %v1856, 2
    %v1858 = vadd.f32 %v1856, %v1857
    %v1859 = vrot.slane %v1858, 1
    %v1860 = vadd.f32 %v1858, %v1859
    %v1861 = vsel %vm710, %v1847, 0.0
    %v1862 = vrot.slane %v1861, 4
    %v1863 = vadd.f32 %v1861, %v1862
    %v1864 = vrot.slane %v1863, 2
    %v1865 = vadd.f32 %v1863, %v1864
    %v1866 = vrot.slane %v1865, 1
    %v1867 = vadd.f32 %v1865, %v1866
    %v1868 = vsel %vm710, %v1848, 0.0
    %v1869 = vrot.slane %v1868, 4
    %v1870 = vadd.f32 %v1868, %v1869
    %v1871 = vrot.slane %v1870, 2
    %v1872 = vadd.f32 %v1870, %v1871
    %v1873 = vrot.slane %v1872, 1
    %v1874 = vadd.f32 %v1872, %v1873
    %v1875 = vsel %vm710, %v1849, 0.0
    %v1876 = vrot.slane %v1875, 4
    %v1877 = vadd.f32 %v1875, %v1876
    %v1878 = vrot.slane %v1877, 2
    %v1879 = vadd.f32 %v1877, %v1878
    %v1880 = vrot.slane %v1879, 1
    %v1881 = vadd.f32 %v1879, %v1880
    %v1882 = vsel %vm710, %v1850, 0.0
    %v1883 = vrot.slane %v1882, 4
    %v1884 = vadd.f32 %v1882, %v1883
    %v1885 = vrot.slane %v1884, 2
    %v1886 = vadd.f32 %v1884, %v1885
    %v1887 = vrot.slane %v1886, 1
    %v1888 = vadd.f32 %v1886, %v1887
    %v1889 = vsel %vm710, %v1851, 0.0
    %v1890 = vrot.slane %v1889, 4
    %v1891 = vadd.f32 %v1889, %v1890
    %v1892 = vrot.slane %v1891, 2
    %v1893 = vadd.f32 %v1891, %v1892
    %v1894 = vrot.slane %v1893, 1
    %v1895 = vadd.f32 %v1893, %v1894
    %v1896 = vsel %vm710, %v1852, 0.0
    %v1897 = vrot.slane %v1896, 4
    %v1898 = vadd.f32 %v1896, %v1897
    %v1899 = vrot.slane %v1898, 2
    %v1900 = vadd.f32 %v1898, %v1899
    %v1901 = vrot.slane %v1900, 1
    %v1902 = vadd.f32 %v1900, %v1901
    %v1903 = vsel %vm710, %v1853, 0.0
    %v1904 = vrot.slane %v1903, 4
    %v1905 = vadd.f32 %v1903, %v1904
    %v1906 = vrot.slane %v1905, 2
    %v1907 = vadd.f32 %v1905, %v1906
    %v1908 = vrot.slane %v1907, 1
    %v1909 = vadd.f32 %v1907, %v1908
    %vm1918 = vcmask 1041409
    %v1919 = vsel %vm1918, %v1867, %v1860
    %vm1920 = vcmask 1042434
    %v1921 = vsel %vm1920, %v1874, %v1919
    %vm1922 = vcmask 1043459
    %v1923 = vsel %vm1922, %v1881, %v1921
    %vm1924 = vcmask 1044484
    %v1925 = vsel %vm1924, %v1888, %v1923
    %vm1926 = vcmask 1045509
    %v1927 = vsel %vm1926, %v1895, %v1925
    %vm1928 = vcmask 1046534
    %v1929 = vsel %vm1928, %v1902, %v1927
    %vm1930 = vcmask 1047559
    %v1931 = vsel %vm1930, %v1909, %v1929
    %1932 = vrot.lane.b32.xlu0 %v1931, 96
    %v1933 = vpop.permute.xlu0 %1932
    %1935 = vst.msk [vmem:[#allocation2] sm:$0xff] %vm47, %v1933
    // Predicated region
    $region34: #{tpu_custom_call.1} parent=1 // pred_check
      _
    $region35: #{tpu_custom_call.1} parent=1 // pred_check_branch
      %1937 = sbr.rel (0) target = $region37
    $region36: #{tpu_custom_call.1} parent=1 // pred_region
      %1939 = vsyncadd [#allocation3], 0
      %s1941 = sshll.u32 [#allocation2], 4
      %s1942 = int_to_ptr.vmem [resolvable:$true] %s1941
      %s1943 = sshll.u32 %s8, 4
      %s1944 = int_to_ptr.hbm [resolvable:$true] %s1943
      %1946 = dma.vmem_to_hbm [thread:$0]  %s1942, 128, %s1944, [#allocation3]
    $region37: #{tpu_custom_call.1} parent=1 // pred_fallthru
      _
    // Predicated region
    $region38: #{tpu_custom_call.1} parent=1 // pred_check
      _
    $region39: #{tpu_custom_call.1} parent=1 // pred_check_branch
      %1948 = sbr.rel (0) target = $region41
    $region40: #{tpu_custom_call.1} parent=1 // pred_region
      %1950 = dma.done [#allocation3], 128
    $region41: #{tpu_custom_call.1} parent=1 // pred_fallthru
      _
    %1951 = vsyncpa [#allocation3], 1

</llo_original>
